<compile_context>
chip_gen: v7x
topology: tpu7x:2x2x1
jax: 0.10.0
libtpu: 0.0.40
codegen_flags: <defaults>
</compile_context>

<pallas_src>
import jax
import jax.numpy as jnp
from jax.experimental import pallas as pl
from jax.experimental.pallas import tpu as pltpu


def _round_up(n, m):
    return (n + m - 1) // m * m


# ---------------------------------------------------------------------------
# Kernel 1: one-time ensemble-weight fold, streamed over D tiles.
#   W_mix[d, c] = sum_e mix[e] * W[e, d, c]
# ---------------------------------------------------------------------------
def fold_weights_kernel(mix_ref, w_ref, o_ref):
    """mix_ref: SMEM [E] f32 (scalar prefetch)
       w_ref:   VMEM [E, TD, Cp] f32  (one D-slab of the stacked member weights)
       o_ref:   VMEM [TD, Cp]         (bf16) combined-weight slab."""
    E = w_ref.shape[0]
    # Single fused expression -> exactly one store of the output tile (no RMW passes).
    acc = mix_ref[0] * w_ref[0]
    for e in range(1, E):
        acc = acc + mix_ref[e] * w_ref[e]
    o_ref[...] = acc.astype(o_ref.dtype)


# ---------------------------------------------------------------------------
# Kernel 2: tiled matmul + bias against the pre-folded weights.
#   out = x @ W_mix + b_mix      (bf16 MXU inputs, f32 accumulate)
# ---------------------------------------------------------------------------
def matmul_bias_kernel(x_ref, w_ref, b_ref, o_ref):
    """x_ref: VMEM [TB, Dp] (f32 or bf16), w_ref: VMEM [Dp, Cp] bf16,
       b_ref: VMEM [1, Cp] f32, o_ref: VMEM [TB, Cp] f32."""
    x = x_ref[...].astype(w_ref.dtype)  # bf16 cast in-kernel (no extra HBM pass)
    acc = jnp.dot(x, w_ref[...], preferred_element_type=jnp.float32)
    o_ref[...] = (acc + b_ref[...]).astype(o_ref.dtype)


def ensemble_forward(x_flat, weights, biases, mixing_weights,
                     compute_dtype=jnp.bfloat16):
    """x_flat: [B, D], weights: [E, D, C], biases: [E, C], mixing_weights: [E]
    -> [B, C] f32 (== sum_e mix[e] * (x @ W_e + b_e))."""
    E, D, C = weights.shape
    B = x_flat.shape[0]

    if E == 0:
        # Matches the PyTorch module's empty-ensemble early return (torch.tensor(0.0)).
        # NOTE: intentionally shape-inconsistent with the normal [B, C] path (module spec).
        return jnp.asarray(0.0, dtype=jnp.float32)

    # TPU-friendly padded extents (zeros are semantically neutral; sliced off below).
    Bp = _round_up(B, 8)           # sublane dim of x / output
    TB = min(Bp, 256)              # 256 fills the 2x256 MXU on v6e/v7x (use 128 on v5e)
    Bp = _round_up(Bp, TB)
    Dp = _round_up(D, 128)         # contraction dim
    Cp = _round_up(C, 128)         # lane dim of W / output -> lane-dense stores

    f32 = jnp.float32
    w_f = weights.astype(f32)
    b_f = biases.astype(f32)
    mix = mixing_weights.astype(f32)

    # Pad x only when the shape actually needs it (avoid a pure-overhead HBM pass);
    # fuse the bf16 cast into the pad when we pad anyway.
    if (Bp != B) or (Dp != D):
        x_in = jnp.pad(x_flat.astype(f32), ((0, Bp - B), (0, Dp - D))).astype(compute_dtype)
    else:
        x_in = x_flat  # cast to bf16 happens in-kernel
    if (Dp != D) or (Cp != C):
        w_f = jnp.pad(w_f, ((0, 0), (0, Dp - D), (0, Cp - C)))

    # ---- bias fold (tiny: E*C elements) done once in the wrapper ----------
    b_mix = mix @ b_f                         # [C]
    if Cp != C:
        b_mix = jnp.pad(b_mix, (0, Cp - C))
    b_mix = b_mix.reshape(1, Cp)

    # ---- weight fold: ONE pallas_call, streamed over D tiles --------------
    TD = 128
    for cand in (2048, 1024, 512, 256, 128):
        if Dp % cand == 0 and E * cand * Cp * 4 <= (8 << 20):
            TD = cand
            break
    w_mix = pl.pallas_call(
        fold_weights_kernel,
        out_shape=jax.ShapeDtypeStruct((Dp, Cp), compute_dtype),
        grid_spec=pltpu.PrefetchScalarGridSpec(
            num_scalar_prefetch=1,                       # mixing weights -> SMEM
            grid=(Dp // TD,),
            in_specs=[pl.BlockSpec((E, TD, Cp), lambda i, mix: (0, i, 0))],
            out_specs=pl.BlockSpec((TD, Cp), lambda i, mix: (i, 0)),
        ),
        compiler_params=pltpu.CompilerParams(dimension_semantics=("parallel",)),
    )(mix, w_f)

    # ---- matmul + bias: grid over batch tiles only ------------------------
    def run_matmul(single_buffer_consts):
        def const_spec(shape):
            # Constant-index blocks: single-buffer them (fetched once; halves VMEM).
            if single_buffer_consts:
                return pl.BlockSpec(shape, lambda i: (0,) * len(shape),
                                    pipeline_mode=pl.Buffered(1))
            return pl.BlockSpec(shape, lambda i: (0,) * len(shape))

        return pl.pallas_call(
            matmul_bias_kernel,
            out_shape=jax.ShapeDtypeStruct((Bp, Cp), jnp.float32),
            grid=(Bp // TB,),
            in_specs=[
                pl.BlockSpec((TB, Dp), lambda i: (i, 0)),   # batch tile of x
                const_spec((Dp, Cp)),                       # folded weights (constant)
                const_spec((1, Cp)),                        # folded bias (constant)
            ],
            out_specs=pl.BlockSpec((TB, Cp), lambda i: (i, 0)),
            compiler_params=pltpu.CompilerParams(dimension_semantics=("parallel",)),
        )(x_in, w_mix, b_mix)

    try:
        out_p = run_matmul(True)
    except Exception:
        # Fallback if this Mosaic build rejects pipeline_mode=pl.Buffered(1).
        out_p = run_matmul(False)

    return out_p[:B, :C]


if __name__ == "__main__":
    # Small shapes consistent with an NCHW image input.
    B, C_IN, H, W = 2, 4, 16, 16           # x: [2, 4, 16, 16]
    D = C_IN * H * W                        # 1024 flattened features
    NUM_CLASSES = 16
    E = 3                                   # ensemble size

    key = jax.random.PRNGKey(0)
    kx, kw, kb = jax.random.split(key, 3)

    x = jax.random.normal(kx, (B, C_IN, H, W), dtype=jnp.float32)
    weights = jax.random.normal(kw, (E, D, NUM_CLASSES), dtype=jnp.float32) * 0.02
    biases = jax.random.normal(kb, (E, NUM_CLASSES), dtype=jnp.float32) * 0.1
    # Default Ensemble mixing: uniform 1/len(model_list)
    mixing_weights = jnp.full((E,), 1.0 / E, dtype=jnp.float32)

    # Plain-JAX glue: flatten NCHW -> [B, D]
    x_flat = x.reshape(B, D)

    out = ensemble_forward(x_flat, weights, biases, mixing_weights)
    out = jax.block_until_ready(out)

    # Reference: res = sum_e mix[e] * (x @ W_e + b_e), all f32.
    ref = jnp.zeros((B, NUM_CLASSES), dtype=jnp.float32)
    for e in range(E):
        ref = ref + mixing_weights[e] * (x_flat @ weights[e] + biases[e])

    assert out.shape == (B, NUM_CLASSES)
    # bf16 MXU inputs (f32 accumulate, f32 fold): tolerance widened vs the all-f32 ref.
    assert jnp.allclose(out, ref, atol=2e-2, rtol=2e-2), "mismatch vs reference"

    print("KERNEL_OK")
</pallas_src>

<mosaic_0001>
module attributes {stable_mosaic.version = 11 : i64} {
  func.func @fold_weights_kernel(%arg0: i32, %arg1: memref<3xf32, #tpu.memory_space<smem>>, %arg2: memref<3x1024x128xf32, #tpu.memory_space<vmem>>, %arg3: memref<1024x128xbf16, #tpu.memory_space<vmem>>) attributes {dimension_semantics = [#tpu.dimension_semantics<parallel>], iteration_bounds = array<i64: 1>, scalar_prefetch = 1 : i64, scratch_operands = 0 : i64, tpu.core_type = #tpu.core_type<tc>, window_params = [{transform_indices = @transform_0, window_bounds = array<i64: 3, 1024, 128>}, {transform_indices = @transform_1, window_bounds = array<i64: 1024, 128>}]} {
    %c0 = arith.constant 0 : index
    %0 = memref.load %arg1[%c0] : memref<3xf32, #tpu.memory_space<smem>>
    %c0_0 = arith.constant 0 : index
    %c0_1 = arith.constant 0 : index
    %c0_2 = arith.constant 0 : index
    %1 = vector.load %arg2[%c0_0, %c0_1, %c0_2] : memref<3x1024x128xf32, #tpu.memory_space<vmem>>, vector<1x1024x128xf32>
    %2 = vector.shape_cast %1 : vector<1x1024x128xf32> to vector<1024x128xf32>
    %3 = vector.broadcast %0 : f32 to vector<1024x128xf32>
    %4 = arith.mulf %3, %2 : vector<1024x128xf32>
    %c1 = arith.constant 1 : index
    %5 = memref.load %arg1[%c1] : memref<3xf32, #tpu.memory_space<smem>>
    %c1_3 = arith.constant 1 : index
    %c0_4 = arith.constant 0 : index
    %c0_5 = arith.constant 0 : index
    %6 = vector.load %arg2[%c1_3, %c0_4, %c0_5] : memref<3x1024x128xf32, #tpu.memory_space<vmem>>, vector<1x1024x128xf32>
    %7 = vector.shape_cast %6 : vector<1x1024x128xf32> to vector<1024x128xf32>
    %8 = vector.broadcast %5 : f32 to vector<1024x128xf32>
    %9 = arith.mulf %8, %7 : vector<1024x128xf32>
    %10 = arith.addf %4, %9 : vector<1024x128xf32>
    %c2 = arith.constant 2 : index
    %11 = memref.load %arg1[%c2] : memref<3xf32, #tpu.memory_space<smem>>
    %c2_6 = arith.constant 2 : index
    %c0_7 = arith.constant 0 : index
    %c0_8 = arith.constant 0 : index
    %12 = vector.load %arg2[%c2_6, %c0_7, %c0_8] : memref<3x1024x128xf32, #tpu.memory_space<vmem>>, vector<1x1024x128xf32>
    %13 = vector.shape_cast %12 : vector<1x1024x128xf32> to vector<1024x128xf32>
    %14 = vector.broadcast %11 : f32 to vector<1024x128xf32>
    %15 = arith.mulf %14, %13 : vector<1024x128xf32>
    %16 = arith.addf %10, %15 : vector<1024x128xf32>
    %17 = arith.truncf %16 : vector<1024x128xf32> to vector<1024x128xbf16>
    %c0_9 = arith.constant 0 : index
    %c0_10 = arith.constant 0 : index
    %18 = vector.load %arg3[%c0_9, %c0_10] : memref<1024x128xbf16, #tpu.memory_space<vmem>>, vector<1024x128xbf16>
    tpu.vector_store %arg3[%c0_9, %c0_10], %17 {strides = array<i32>} : memref<1024x128xbf16, #tpu.memory_space<vmem>>, vector<1024x128xbf16>,
    return
  }
  func.func @transform_0(%arg0: i32, %arg1: memref<3xf32, #tpu.memory_space<smem>>) -> (i32, i32, i32) {
    %c0_i32 = arith.constant 0 : i32
    %c0_i32_0 = arith.constant 0 : i32
    %c0_i32_1 = arith.constant 0 : i32
    return %c0_i32, %arg0, %c0_i32_0 : i32, i32, i32
  }
  func.func @transform_1(%arg0: i32, %arg1: memref<3xf32, #tpu.memory_space<smem>>) -> (i32, i32) {
    %c0_i32 = arith.constant 0 : i32
    %c0_i32_0 = arith.constant 0 : i32
    return %arg0, %c0_i32 : i32, i32
  }
}

</mosaic_0001>

<llo_original>
// kernel: tpu_custom_call.1
$region0: #{tpu_custom_call.1}
  #allocation0 [shape = 'u32[]', space=smem, size = 0x4, offset = 0x4, fixed_abs, tag = 'smem constant byte address 0x4 - core index']
  #allocation1 [shape = 'u32[144,128]{1,0:T(1,128)}', space=vmem, size = 0x12000, scoped, tag = 'internal scratch']
  #allocation2 [shape = 's32[1]{0}', space=sflag, size = 0x4, scoped, tag = 'scoped memory for tpu_custom_call.1']
  #allocation3 [shape = 'u8[512]{0}', space=smem, size = 0x200, scoped, tag = 'prefetched SMEM operand 0']
  %s0 = inlined_call_operand.hbm [shape: f32[3], index: 0, kind: input, shape index: {}]
  %s1 = inlined_call_operand.hbm [shape: f32[3,1024,128], index: 1, kind: input, shape index: {}]
  %s2 = inlined_call_operand.hbm [shape: bf16[1024,128], index: 2, kind: output, shape index: {}]
  %s3 = sld [smem:[#allocation0]]
  $region18: #{tpu_custom_call.1} parent=0
    _
  %s5 = ssub.s32 1, %s3
  %s6 = scalar_select 0, %s5, %s3
  %8 = dma.hbm_to_smem %s0, 16, [#allocation3], [#allocation2]
  %9 = dma.done [#allocation2], 16
  %10 = sfence
  $region1: #{tpu_custom_call.1} parent=0
    #allocation4 [shape = 'u8[1572864]{0}', space=vmem, size = 0x180000, scoped, tag = 'input window, operand 1, single buffered']
    #allocation5 [shape = 's32[1]{0}', space=sflag, size = 0x4, scoped, tag = 'scoped memory for tpu_custom_call.1']
    #allocation6 [shape = 's32[1]{0}', space=sflag, size = 0x4, scoped, tag = 'scoped memory for tpu_custom_call.1']
    #allocation7 [shape = 'u8[262144]{0}', space=vmem, size = 0x40000, scoped, tag = 'output window, operand 0, single buffered']
    %11 = vsyncpa [#allocation5], 0
    %12 = vsyncpa [#allocation6], 0
    // Predicated region
    $region2: #{tpu_custom_call.1} parent=1 // pred_check
      _
    $region3: #{tpu_custom_call.1} parent=1 // pred_check_branch
      %14 = sbr.rel (0) target = $region5
    $region4: #{tpu_custom_call.1} parent=1 // pred_region
      %s16 = ssub.s32 49152, 49152
      %17 = vsyncadd [#allocation5], %s16
      %s18 = sshll.u32 [#allocation4], 4
      %s19 = int_to_ptr.vmem [resolvable:$true] %s18
      %24 = dma.hbm_to_vmem [thread:$0]  %s1, 49152, %s19, [#allocation5], 128, 128, 8
    $region5: #{tpu_custom_call.1} parent=1 // pred_fallthru
      _
    // Predicated region
    $region6: #{tpu_custom_call.1} parent=1 // pred_check
      _
    $region7: #{tpu_custom_call.1} parent=1 // pred_check_branch
      %26 = sbr.rel (0) target = $region9
    $region8: #{tpu_custom_call.1} parent=1 // pred_region
      %27 = dma.done [#allocation5], 49152
    $region9: #{tpu_custom_call.1} parent=1 // pred_fallthru
      _
    %s28 = sld [smem:[#allocation3]]
    %v29 = vld [vmem:[#allocation4] sm:$0xff]
    %v30 = vld [vmem:[#allocation4 + $0x8] sm:$0xff]
    %v31 = vld [vmem:[#allocation4 + $0x10] sm:$0xff]
    %v32 = vld [vmem:[#allocation4 + $0x18] sm:$0xff]
    %v33 = vld [vmem:[#allocation4 + $0x20] sm:$0xff]
    %v34 = vld [vmem:[#allocation4 + $0x28] sm:$0xff]
    %v35 = vld [vmem:[#allocation4 + $0x30] sm:$0xff]
    %v36 = vld [vmem:[#allocation4 + $0x38] sm:$0xff]
    %v37 = vld [vmem:[#allocation4 + $0x40] sm:$0xff]
    %v38 = vld [vmem:[#allocation4 + $0x48] sm:$0xff]
    %v39 = vld [vmem:[#allocation4 + $0x50] sm:$0xff]
    %v40 = vld [vmem:[#allocation4 + $0x58] sm:$0xff]
    %v41 = vld [vmem:[#allocation4 + $0x60] sm:$0xff]
    %v42 = vld [vmem:[#allocation4 + $0x68] sm:$0xff]
    %v43 = vld [vmem:[#allocation4 + $0x70] sm:$0xff]
    %v44 = vld [vmem:[#allocation4 + $0x78] sm:$0xff]
    %v45 = vld [vmem:[#allocation4 + $0x80] sm:$0xff]
    %v46 = vld [vmem:[#allocation4 + $0x88] sm:$0xff]
    %v47 = vld [vmem:[#allocation4 + $0x90] sm:$0xff]
    %v48 = vld [vmem:[#allocation4 + $0x98] sm:$0xff]
    %v49 = vld [vmem:[#allocation4 + $0xa0] sm:$0xff]
    %v50 = vld [vmem:[#allocation4 + $0xa8] sm:$0xff]
    %v51 = vld [vmem:[#allocation4 + $0xb0] sm:$0xff]
    %v52 = vld [vmem:[#allocation4 + $0xb8] sm:$0xff]
    %v53 = vld [vmem:[#allocation4 + $0xc0] sm:$0xff]
    %v54 = vld [vmem:[#allocation4 + $0xc8] sm:$0xff]
    %v55 = vld [vmem:[#allocation4 + $0xd0] sm:$0xff]
    %v56 = vld [vmem:[#allocation4 + $0xd8] sm:$0xff]
    %v57 = vld [vmem:[#allocation4 + $0xe0] sm:$0xff]
    %v58 = vld [vmem:[#allocation4 + $0xe8] sm:$0xff]
    %v59 = vld [vmem:[#allocation4 + $0xf0] sm:$0xff]
    %v60 = vld [vmem:[#allocation4 + $0xf8] sm:$0xff]
    %v61 = vld [vmem:[#allocation4 + $0x100] sm:$0xff]
    %v62 = vld [vmem:[#allocation4 + $0x108] sm:$0xff]
    %v63 = vld [vmem:[#allocation4 + $0x110] sm:$0xff]
    %v64 = vld [vmem:[#allocation4 + $0x118] sm:$0xff]
    %v65 = vld [vmem:[#allocation4 + $0x120] sm:$0xff]
    %v66 = vld [vmem:[#allocation4 + $0x128] sm:$0xff]
    %v67 = vld [vmem:[#allocation4 + $0x130] sm:$0xff]
    %v68 = vld [vmem:[#allocation4 + $0x138] sm:$0xff]
    %v69 = vld [vmem:[#allocation4 + $0x140] sm:$0xff]
    %v70 = vld [vmem:[#allocation4 + $0x148] sm:$0xff]
    %v71 = vld [vmem:[#allocation4 + $0x150] sm:$0xff]
    %v72 = vld [vmem:[#allocation4 + $0x158] sm:$0xff]
    %v73 = vld [vmem:[#allocation4 + $0x160] sm:$0xff]
    %v74 = vld [vmem:[#allocation4 + $0x168] sm:$0xff]
    %v75 = vld [vmem:[#allocation4 + $0x170] sm:$0xff]
    %v76 = vld [vmem:[#allocation4 + $0x178] sm:$0xff]
    %v77 = vld [vmem:[#allocation4 + $0x180] sm:$0xff]
    %v78 = vld [vmem:[#allocation4 + $0x188] sm:$0xff]
    %v79 = vld [vmem:[#allocation4 + $0x190] sm:$0xff]
    %v80 = vld [vmem:[#allocation4 + $0x198] sm:$0xff]
    %v81 = vld [vmem:[#allocation4 + $0x1a0] sm:$0xff]
    %v82 = vld [vmem:[#allocation4 + $0x1a8] sm:$0xff]
    %v83 = vld [vmem:[#allocation4 + $0x1b0] sm:$0xff]
    %v84 = vld [vmem:[#allocation4 + $0x1b8] sm:$0xff]
    %v85 = vld [vmem:[#allocation4 + $0x1c0] sm:$0xff]
    %v86 = vld [vmem:[#allocation4 + $0x1c8] sm:$0xff]
    %v87 = vld [vmem:[#allocation4 + $0x1d0] sm:$0xff]
    %v88 = vld [vmem:[#allocation4 + $0x1d8] sm:$0xff]
    %v89 = vld [vmem:[#allocation4 + $0x1e0] sm:$0xff]
    %v90 = vld [vmem:[#allocation4 + $0x1e8] sm:$0xff]
    %v91 = vld [vmem:[#allocation4 + $0x1f0] sm:$0xff]
    %v92 = vld [vmem:[#allocation4 + $0x1f8] sm:$0xff]
    %v93 = vld [vmem:[#allocation4 + $0x200] sm:$0xff]
    %v94 = vld [vmem:[#allocation4 + $0x208] sm:$0xff]
    %v95 = vld [vmem:[#allocation4 + $0x210] sm:$0xff]
    %v96 = vld [vmem:[#allocation4 + $0x218] sm:$0xff]
    %v97 = vld [vmem:[#allocation4 + $0x220] sm:$0xff]
    %v98 = vld [vmem:[#allocation4 + $0x228] sm:$0xff]
    %v99 = vld [vmem:[#allocation4 + $0x230] sm:$0xff]
    %v100 = vld [vmem:[#allocation4 + $0x238] sm:$0xff]
    %v101 = vld [vmem:[#allocation4 + $0x240] sm:$0xff]
    %v102 = vld [vmem:[#allocation4 + $0x248] sm:$0xff]
    %v103 = vld [vmem:[#allocation4 + $0x250] sm:$0xff]
    %v104 = vld [vmem:[#allocation4 + $0x258] sm:$0xff]
    %v105 = vld [vmem:[#allocation4 + $0x260] sm:$0xff]
    %v106 = vld [vmem:[#allocation4 + $0x268] sm:$0xff]
    %v107 = vld [vmem:[#allocation4 + $0x270] sm:$0xff]
    %v108 = vld [vmem:[#allocation4 + $0x278] sm:$0xff]
    %v109 = vld [vmem:[#allocation4 + $0x280] sm:$0xff]
    %v110 = vld [vmem:[#allocation4 + $0x288] sm:$0xff]
    %v111 = vld [vmem:[#allocation4 + $0x290] sm:$0xff]
    %v112 = vld [vmem:[#allocation4 + $0x298] sm:$0xff]
    %v113 = vld [vmem:[#allocation4 + $0x2a0] sm:$0xff]
    %v114 = vld [vmem:[#allocation4 + $0x2a8] sm:$0xff]
    %v115 = vld [vmem:[#allocation4 + $0x2b0] sm:$0xff]
    %v116 = vld [vmem:[#allocation4 + $0x2b8] sm:$0xff]
    %v117 = vld [vmem:[#allocation4 + $0x2c0] sm:$0xff]
    %v118 = vld [vmem:[#allocation4 + $0x2c8] sm:$0xff]
    %v119 = vld [vmem:[#allocation4 + $0x2d0] sm:$0xff]
    %v120 = vld [vmem:[#allocation4 + $0x2d8] sm:$0xff]
    %v121 = vld [vmem:[#allocation4 + $0x2e0] sm:$0xff]
    %v122 = vld [vmem:[#allocation4 + $0x2e8] sm:$0xff]
    %v123 = vld [vmem:[#allocation4 + $0x2f0] sm:$0xff]
    %v124 = vld [vmem:[#allocation4 + $0x2f8] sm:$0xff]
    %v125 = vld [vmem:[#allocation4 + $0x300] sm:$0xff]
    %v126 = vld [vmem:[#allocation4 + $0x308] sm:$0xff]
    %v127 = vld [vmem:[#allocation4 + $0x310] sm:$0xff]
    %v128 = vld [vmem:[#allocation4 + $0x318] sm:$0xff]
    %v129 = vld [vmem:[#allocation4 + $0x320] sm:$0xff]
    %v130 = vld [vmem:[#allocation4 + $0x328] sm:$0xff]
    %v131 = vld [vmem:[#allocation4 + $0x330] sm:$0xff]
    %v132 = vld [vmem:[#allocation4 + $0x338] sm:$0xff]
    %v133 = vld [vmem:[#allocation4 + $0x340] sm:$0xff]
    %v134 = vld [vmem:[#allocation4 + $0x348] sm:$0xff]
    %v135 = vld [vmem:[#allocation4 + $0x350] sm:$0xff]
    %v136 = vld [vmem:[#allocation4 + $0x358] sm:$0xff]
    %v137 = vld [vmem:[#allocation4 + $0x360] sm:$0xff]
    %v138 = vld [vmem:[#allocation4 + $0x368] sm:$0xff]
    %v139 = vld [vmem:[#allocation4 + $0x370] sm:$0xff]
    %v140 = vld [vmem:[#allocation4 + $0x378] sm:$0xff]
    %v141 = vld [vmem:[#allocation4 + $0x380] sm:$0xff]
    %v142 = vld [vmem:[#allocation4 + $0x388] sm:$0xff]
    %v143 = vld [vmem:[#allocation4 + $0x390] sm:$0xff]
    %v144 = vld [vmem:[#allocation4 + $0x398] sm:$0xff]
    %v145 = vld [vmem:[#allocation4 + $0x3a0] sm:$0xff]
    %v146 = vld [vmem:[#allocation4 + $0x3a8] sm:$0xff]
    %v147 = vld [vmem:[#allocation4 + $0x3b0] sm:$0xff]
    %v148 = vld [vmem:[#allocation4 + $0x3b8] sm:$0xff]
    %v149 = vld [vmem:[#allocation4 + $0x3c0] sm:$0xff]
    %v150 = vld [vmem:[#allocation4 + $0x3c8] sm:$0xff]
    %v151 = vld [vmem:[#allocation4 + $0x3d0] sm:$0xff]
    %v152 = vld [vmem:[#allocation4 + $0x3d8] sm:$0xff]
    %v153 = vld [vmem:[#allocation4 + $0x3e0] sm:$0xff]
    %v154 = vld [vmem:[#allocation4 + $0x3e8] sm:$0xff]
    %v155 = vld [vmem:[#allocation4 + $0x3f0] sm:$0xff]
    %v156 = vld [vmem:[#allocation4 + $0x3f8] sm:$0xff]
    %v157 = vstv %s28
    %v158 = vmul.f32 %v157, %v29
    %v159 = vmul.f32 %v157, %v30
    %v160 = vmul.f32 %v157, %v31
    %v161 = vmul.f32 %v157, %v32
    %v162 = vmul.f32 %v157, %v33
    %v163 = vmul.f32 %v157, %v34
    %v164 = vmul.f32 %v157, %v35
    %v165 = vmul.f32 %v157, %v36
    %v166 = vmul.f32 %v157, %v37
    %v167 = vmul.f32 %v157, %v38
    %v168 = vmul.f32 %v157, %v39
    %v169 = vmul.f32 %v157, %v40
    %v170 = vmul.f32 %v157, %v41
    %v171 = vmul.f32 %v157, %v42
    %v172 = vmul.f32 %v157, %v43
    %v173 = vmul.f32 %v157, %v44
    %v174 = vmul.f32 %v157, %v45
    %v175 = vmul.f32 %v157, %v46
    %v176 = vmul.f32 %v157, %v47
    %v177 = vmul.f32 %v157, %v48
    %v178 = vmul.f32 %v157, %v49
    %v179 = vmul.f32 %v157, %v50
    %v180 = vmul.f32 %v157, %v51
    %v181 = vmul.f32 %v157, %v52
    %v182 = vmul.f32 %v157, %v53
    %v183 = vmul.f32 %v157, %v54
    %v184 = vmul.f32 %v157, %v55
    %v185 = vmul.f32 %v157, %v56
    %v186 = vmul.f32 %v157, %v57
    %v187 = vmul.f32 %v157, %v58
    %v188 = vmul.f32 %v157, %v59
    %v189 = vmul.f32 %v157, %v60
    %v190 = vmul.f32 %v157, %v61
    %v191 = vmul.f32 %v157, %v62
    %v192 = vmul.f32 %v157, %v63
    %v193 = vmul.f32 %v157, %v64
    %v194 = vmul.f32 %v157, %v65
    %v195 = vmul.f32 %v157, %v66
    %v196 = vmul.f32 %v157, %v67
    %v197 = vmul.f32 %v157, %v68
    %v198 = vmul.f32 %v157, %v69
    %v199 = vmul.f32 %v157, %v70
    %v200 = vmul.f32 %v157, %v71
    %v201 = vmul.f32 %v157, %v72
    %v202 = vmul.f32 %v157, %v73
    %v203 = vmul.f32 %v157, %v74
    %v204 = vmul.f32 %v157, %v75
    %v205 = vmul.f32 %v157, %v76
    %v206 = vmul.f32 %v157, %v77
    %v207 = vmul.f32 %v157, %v78
    %v208 = vmul.f32 %v157, %v79
    %v209 = vmul.f32 %v157, %v80
    %v210 = vmul.f32 %v157, %v81
    %v211 = vmul.f32 %v157, %v82
    %v212 = vmul.f32 %v157, %v83
    %v213 = vmul.f32 %v157, %v84
    %v214 = vmul.f32 %v157, %v85
    %v215 = vmul.f32 %v157, %v86
    %v216 = vmul.f32 %v157, %v87
    %v217 = vmul.f32 %v157, %v88
    %v218 = vmul.f32 %v157, %v89
    %v219 = vmul.f32 %v157, %v90
    %v220 = vmul.f32 %v157, %v91
    %v221 = vmul.f32 %v157, %v92
    %v222 = vmul.f32 %v157, %v93
    %v223 = vmul.f32 %v157, %v94
    %v224 = vmul.f32 %v157, %v95
    %v225 = vmul.f32 %v157, %v96
    %v226 = vmul.f32 %v157, %v97
    %v227 = vmul.f32 %v157, %v98
    %v228 = vmul.f32 %v157, %v99
    %v229 = vmul.f32 %v157, %v100
    %v230 = vmul.f32 %v157, %v101
    %v231 = vmul.f32 %v157, %v102
    %v232 = vmul.f32 %v157, %v103
    %v233 = vmul.f32 %v157, %v104
    %v234 = vmul.f32 %v157, %v105
    %v235 = vmul.f32 %v157, %v106
    %v236 = vmul.f32 %v157, %v107
    %v237 = vmul.f32 %v157, %v108
    %v238 = vmul.f32 %v157, %v109
    %v239 = vmul.f32 %v157, %v110
    %v240 = vmul.f32 %v157, %v111
    %v241 = vmul.f32 %v157, %v112
    %v242 = vmul.f32 %v157, %v113
    %v243 = vmul.f32 %v157, %v114
    %v244 = vmul.f32 %v157, %v115
    %v245 = vmul.f32 %v157, %v116
    %v246 = vmul.f32 %v157, %v117
    %v247 = vmul.f32 %v157, %v118
    %v248 = vmul.f32 %v157, %v119
    %v249 = vmul.f32 %v157, %v120
    %v250 = vmul.f32 %v157, %v121
    %v251 = vmul.f32 %v157, %v122
    %v252 = vmul.f32 %v157, %v123
    %v253 = vmul.f32 %v157, %v124
    %v254 = vmul.f32 %v157, %v125
    %v255 = vmul.f32 %v157, %v126
    %v256 = vmul.f32 %v157, %v127
    %v257 = vmul.f32 %v157, %v128
    %v258 = vmul.f32 %v157, %v129
    %v259 = vmul.f32 %v157, %v130
    %v260 = vmul.f32 %v157, %v131
    %v261 = vmul.f32 %v157, %v132
    %v262 = vmul.f32 %v157, %v133
    %v263 = vmul.f32 %v157, %v134
    %v264 = vmul.f32 %v157, %v135
    %v265 = vmul.f32 %v157, %v136
    %v266 = vmul.f32 %v157, %v137
    %v267 = vmul.f32 %v157, %v138
    %v268 = vmul.f32 %v157, %v139
    %v269 = vmul.f32 %v157, %v140
    %v270 = vmul.f32 %v157, %v141
    %v271 = vmul.f32 %v157, %v142
    %v272 = vmul.f32 %v157, %v143
    %v273 = vmul.f32 %v157, %v144
    %v274 = vmul.f32 %v157, %v145
    %v275 = vmul.f32 %v157, %v146
    %v276 = vmul.f32 %v157, %v147
    %v277 = vmul.f32 %v157, %v148
    %v278 = vmul.f32 %v157, %v149
    %v279 = vmul.f32 %v157, %v150
    %v280 = vmul.f32 %v157, %v151
    %v281 = vmul.f32 %v157, %v152
    %v282 = vmul.f32 %v157, %v153
    %v283 = vmul.f32 %v157, %v154
    %v284 = vmul.f32 %v157, %v155
    %v285 = vmul.f32 %v157, %v156
    %s286 = sld [smem:[#allocation3 + $0x1]]
    %s287 = scalar_lea.vmem [#allocation4], 1024
    %v288 = vld [vmem:[%s287] sm:$0xff]
    %v289 = vld [vmem:[%s287 + $0x8] sm:$0xff]
    %v290 = vld [vmem:[%s287 + $0x10] sm:$0xff]
    %v291 = vld [vmem:[%s287 + $0x18] sm:$0xff]
    %v292 = vld [vmem:[%s287 + $0x20] sm:$0xff]
    %v293 = vld [vmem:[%s287 + $0x28] sm:$0xff]
    %v294 = vld [vmem:[%s287 + $0x30] sm:$0xff]
    %v295 = vld [vmem:[%s287 + $0x38] sm:$0xff]
    %v296 = vld [vmem:[%s287 + $0x40] sm:$0xff]
    %v297 = vld [vmem:[%s287 + $0x48] sm:$0xff]
    %v298 = vld [vmem:[%s287 + $0x50] sm:$0xff]
    %v299 = vld [vmem:[%s287 + $0x58] sm:$0xff]
    %v300 = vld [vmem:[%s287 + $0x60] sm:$0xff]
    %v301 = vld [vmem:[%s287 + $0x68] sm:$0xff]
    %v302 = vld [vmem:[%s287 + $0x70] sm:$0xff]
    %v303 = vld [vmem:[%s287 + $0x78] sm:$0xff]
    %v304 = vld [vmem:[%s287 + $0x80] sm:$0xff]
    %v305 = vld [vmem:[%s287 + $0x88] sm:$0xff]
    %v306 = vld [vmem:[%s287 + $0x90] sm:$0xff]
    %v307 = vld [vmem:[%s287 + $0x98] sm:$0xff]
    %v308 = vld [vmem:[%s287 + $0xa0] sm:$0xff]
    %v309 = vld [vmem:[%s287 + $0xa8] sm:$0xff]
    %v310 = vld [vmem:[%s287 + $0xb0] sm:$0xff]
    %v311 = vld [vmem:[%s287 + $0xb8] sm:$0xff]
    %v312 = vld [vmem:[%s287 + $0xc0] sm:$0xff]
    %v313 = vld [vmem:[%s287 + $0xc8] sm:$0xff]
    %v314 = vld [vmem:[%s287 + $0xd0] sm:$0xff]
    %v315 = vld [vmem:[%s287 + $0xd8] sm:$0xff]
    %v316 = vld [vmem:[%s287 + $0xe0] sm:$0xff]
    %v317 = vld [vmem:[%s287 + $0xe8] sm:$0xff]
    %v318 = vld [vmem:[%s287 + $0xf0] sm:$0xff]
    %v319 = vld [vmem:[%s287 + $0xf8] sm:$0xff]
    %v320 = vld [vmem:[%s287 + $0x100] sm:$0xff]
    %v321 = vld [vmem:[%s287 + $0x108] sm:$0xff]
    %v322 = vld [vmem:[%s287 + $0x110] sm:$0xff]
    %v323 = vld [vmem:[%s287 + $0x118] sm:$0xff]
    %v324 = vld [vmem:[%s287 + $0x120] sm:$0xff]
    %v325 = vld [vmem:[%s287 + $0x128] sm:$0xff]
    %v326 = vld [vmem:[%s287 + $0x130] sm:$0xff]
    %v327 = vld [vmem:[%s287 + $0x138] sm:$0xff]
    %v328 = vld [vmem:[%s287 + $0x140] sm:$0xff]
    %v329 = vld [vmem:[%s287 + $0x148] sm:$0xff]
    %v330 = vld [vmem:[%s287 + $0x150] sm:$0xff]
    %v331 = vld [vmem:[%s287 + $0x158] sm:$0xff]
    %v332 = vld [vmem:[%s287 + $0x160] sm:$0xff]
    %v333 = vld [vmem:[%s287 + $0x168] sm:$0xff]
    %v334 = vld [vmem:[%s287 + $0x170] sm:$0xff]
    %v335 = vld [vmem:[%s287 + $0x178] sm:$0xff]
    %v336 = vld [vmem:[%s287 + $0x180] sm:$0xff]
    %v337 = vld [vmem:[%s287 + $0x188] sm:$0xff]
    %v338 = vld [vmem:[%s287 + $0x190] sm:$0xff]
    %v339 = vld [vmem:[%s287 + $0x198] sm:$0xff]
    %v340 = vld [vmem:[%s287 + $0x1a0] sm:$0xff]
    %v341 = vld [vmem:[%s287 + $0x1a8] sm:$0xff]
    %v342 = vld [vmem:[%s287 + $0x1b0] sm:$0xff]
    %v343 = vld [vmem:[%s287 + $0x1b8] sm:$0xff]
    %v344 = vld [vmem:[%s287 + $0x1c0] sm:$0xff]
    %v345 = vld [vmem:[%s287 + $0x1c8] sm:$0xff]
    %v346 = vld [vmem:[%s287 + $0x1d0] sm:$0xff]
    %v347 = vld [vmem:[%s287 + $0x1d8] sm:$0xff]
    %v348 = vld [vmem:[%s287 + $0x1e0] sm:$0xff]
    %v349 = vld [vmem:[%s287 + $0x1e8] sm:$0xff]
    %v350 = vld [vmem:[%s287 + $0x1f0] sm:$0xff]
    %v351 = vld [vmem:[%s287 + $0x1f8] sm:$0xff]
    %v352 = vld [vmem:[%s287 + $0x200] sm:$0xff]
    %v353 = vld [vmem:[%s287 + $0x208] sm:$0xff]
    %v354 = vld [vmem:[%s287 + $0x210] sm:$0xff]
    %v355 = vld [vmem:[%s287 + $0x218] sm:$0xff]
    %v356 = vld [vmem:[%s287 + $0x220] sm:$0xff]
    %v357 = vld [vmem:[%s287 + $0x228] sm:$0xff]
    %v358 = vld [vmem:[%s287 + $0x230] sm:$0xff]
    %v359 = vld [vmem:[%s287 + $0x238] sm:$0xff]
    %v360 = vld [vmem:[%s287 + $0x240] sm:$0xff]
    %v361 = vld [vmem:[%s287 + $0x248] sm:$0xff]
    %v362 = vld [vmem:[%s287 + $0x250] sm:$0xff]
    %v363 = vld [vmem:[%s287 + $0x258] sm:$0xff]
    %v364 = vld [vmem:[%s287 + $0x260] sm:$0xff]
    %v365 = vld [vmem:[%s287 + $0x268] sm:$0xff]
    %v366 = vld [vmem:[%s287 + $0x270] sm:$0xff]
    %v367 = vld [vmem:[%s287 + $0x278] sm:$0xff]
    %v368 = vld [vmem:[%s287 + $0x280] sm:$0xff]
    %v369 = vld [vmem:[%s287 + $0x288] sm:$0xff]
    %v370 = vld [vmem:[%s287 + $0x290] sm:$0xff]
    %v371 = vld [vmem:[%s287 + $0x298] sm:$0xff]
    %v372 = vld [vmem:[%s287 + $0x2a0] sm:$0xff]
    %v373 = vld [vmem:[%s287 + $0x2a8] sm:$0xff]
    %v374 = vld [vmem:[%s287 + $0x2b0] sm:$0xff]
    %v375 = vld [vmem:[%s287 + $0x2b8] sm:$0xff]
    %v376 = vld [vmem:[%s287 + $0x2c0] sm:$0xff]
    %v377 = vld [vmem:[%s287 + $0x2c8] sm:$0xff]
    %v378 = vld [vmem:[%s287 + $0x2d0] sm:$0xff]
    %v379 = vld [vmem:[%s287 + $0x2d8] sm:$0xff]
    %v380 = vld [vmem:[%s287 + $0x2e0] sm:$0xff]
    %v381 = vld [vmem:[%s287 + $0x2e8] sm:$0xff]
    %v382 = vld [vmem:[%s287 + $0x2f0] sm:$0xff]
    %v383 = vld [vmem:[%s287 + $0x2f8] sm:$0xff]
    %v384 = vld [vmem:[%s287 + $0x300] sm:$0xff]
    %v385 = vld [vmem:[%s287 + $0x308] sm:$0xff]
    %v386 = vld [vmem:[%s287 + $0x310] sm:$0xff]
    %v387 = vld [vmem:[%s287 + $0x318] sm:$0xff]
    %v388 = vld [vmem:[%s287 + $0x320] sm:$0xff]
    %v389 = vld [vmem:[%s287 + $0x328] sm:$0xff]
    %v390 = vld [vmem:[%s287 + $0x330] sm:$0xff]
    %v391 = vld [vmem:[%s287 + $0x338] sm:$0xff]
    %v392 = vld [vmem:[%s287 + $0x340] sm:$0xff]
    %v393 = vld [vmem:[%s287 + $0x348] sm:$0xff]
    %v394 = vld [vmem:[%s287 + $0x350] sm:$0xff]
    %v395 = vld [vmem:[%s287 + $0x358] sm:$0xff]
    %v396 = vld [vmem:[%s287 + $0x360] sm:$0xff]
    %v397 = vld [vmem:[%s287 + $0x368] sm:$0xff]
    %v398 = vld [vmem:[%s287 + $0x370] sm:$0xff]
    %v399 = vld [vmem:[%s287 + $0x378] sm:$0xff]
    %v400 = vld [vmem:[%s287 + $0x380] sm:$0xff]
    %v401 = vld [vmem:[%s287 + $0x388] sm:$0xff]
    %v402 = vld [vmem:[%s287 + $0x390] sm:$0xff]
    %v403 = vld [vmem:[%s287 + $0x398] sm:$0xff]
    %v404 = vld [vmem:[%s287 + $0x3a0] sm:$0xff]
    %v405 = vld [vmem:[%s287 + $0x3a8] sm:$0xff]
    %v406 = vld [vmem:[%s287 + $0x3b0] sm:$0xff]
    %v407 = vld [vmem:[%s287 + $0x3b8] sm:$0xff]
    %v408 = vld [vmem:[%s287 + $0x3c0] sm:$0xff]
    %v409 = vld [vmem:[%s287 + $0x3c8] sm:$0xff]
    %v410 = vld [vmem:[%s287 + $0x3d0] sm:$0xff]
    %v411 = vld [vmem:[%s287 + $0x3d8] sm:$0xff]
    %v412 = vld [vmem:[%s287 + $0x3e0] sm:$0xff]
    %v413 = vld [vmem:[%s287 + $0x3e8] sm:$0xff]
    %v414 = vld [vmem:[%s287 + $0x3f0] sm:$0xff]
    %v415 = vld [vmem:[%s287 + $0x3f8] sm:$0xff]
    %v416 = vstv %s286
    %v417 = vmul.f32 %v416, %v288
    %v418 = vmul.f32 %v416, %v289
    %v419 = vmul.f32 %v416, %v290
    %v420 = vmul.f32 %v416, %v291
    %v421 = vmul.f32 %v416, %v292
    %v422 = vmul.f32 %v416, %v293
    %v423 = vmul.f32 %v416, %v294
    %v424 = vmul.f32 %v416, %v295
    %v425 = vmul.f32 %v416, %v296
    %v426 = vmul.f32 %v416, %v297
    %v427 = vmul.f32 %v416, %v298
    %v428 = vmul.f32 %v416, %v299
    %v429 = vmul.f32 %v416, %v300
    %v430 = vmul.f32 %v416, %v301
    %v431 = vmul.f32 %v416, %v302
    %v432 = vmul.f32 %v416, %v303
    %v433 = vmul.f32 %v416, %v304
    %v434 = vmul.f32 %v416, %v305
    %v435 = vmul.f32 %v416, %v306
    %v436 = vmul.f32 %v416, %v307
    %v437 = vmul.f32 %v416, %v308
    %v438 = vmul.f32 %v416, %v309
    %v439 = vmul.f32 %v416, %v310
    %v440 = vmul.f32 %v416, %v311
    %v441 = vmul.f32 %v416, %v312
    %v442 = vmul.f32 %v416, %v313
    %v443 = vmul.f32 %v416, %v314
    %v444 = vmul.f32 %v416, %v315
    %v445 = vmul.f32 %v416, %v316
    %v446 = vmul.f32 %v416, %v317
    %v447 = vmul.f32 %v416, %v318
    %v448 = vmul.f32 %v416, %v319
    %v449 = vmul.f32 %v416, %v320
    %v450 = vmul.f32 %v416, %v321
    %v451 = vmul.f32 %v416, %v322
    %v452 = vmul.f32 %v416, %v323
    %v453 = vmul.f32 %v416, %v324
    %v454 = vmul.f32 %v416, %v325
    %v455 = vmul.f32 %v416, %v326
    %v456 = vmul.f32 %v416, %v327
    %v457 = vmul.f32 %v416, %v328
    %v458 = vmul.f32 %v416, %v329
    %v459 = vmul.f32 %v416, %v330
    %v460 = vmul.f32 %v416, %v331
    %v461 = vmul.f32 %v416, %v332
    %v462 = vmul.f32 %v416, %v333
    %v463 = vmul.f32 %v416, %v334
    %v464 = vmul.f32 %v416, %v335
    %v465 = vmul.f32 %v416, %v336
    %v466 = vmul.f32 %v416, %v337
    %v467 = vmul.f32 %v416, %v338
    %v468 = vmul.f32 %v416, %v339
    %v469 = vmul.f32 %v416, %v340
    %v470 = vmul.f32 %v416, %v341
    %v471 = vmul.f32 %v416, %v342
    %v472 = vmul.f32 %v416, %v343
    %v473 = vmul.f32 %v416, %v344
    %v474 = vmul.f32 %v416, %v345
    %v475 = vmul.f32 %v416, %v346
    %v476 = vmul.f32 %v416, %v347
    %v477 = vmul.f32 %v416, %v348
    %v478 = vmul.f32 %v416, %v349
    %v479 = vmul.f32 %v416, %v350
    %v480 = vmul.f32 %v416, %v351
    %v481 = vmul.f32 %v416, %v352
    %v482 = vmul.f32 %v416, %v353
    %v483 = vmul.f32 %v416, %v354
    %v484 = vmul.f32 %v416, %v355
    %v485 = vmul.f32 %v416, %v356
    %v486 = vmul.f32 %v416, %v357
    %v487 = vmul.f32 %v416, %v358
    %v488 = vmul.f32 %v416, %v359
    %v489 = vmul.f32 %v416, %v360
    %v490 = vmul.f32 %v416, %v361
    %v491 = vmul.f32 %v416, %v362
    %v492 = vmul.f32 %v416, %v363
    %v493 = vmul.f32 %v416, %v364
    %v494 = vmul.f32 %v416, %v365
    %v495 = vmul.f32 %v416, %v366
    %v496 = vmul.f32 %v416, %v367
    %v497 = vmul.f32 %v416, %v368
    %v498 = vmul.f32 %v416, %v369
    %v499 = vmul.f32 %v416, %v370
    %v500 = vmul.f32 %v416, %v371
    %v501 = vmul.f32 %v416, %v372
    %v502 = vmul.f32 %v416, %v373
    %v503 = vmul.f32 %v416, %v374
    %v504 = vmul.f32 %v416, %v375
    %v505 = vmul.f32 %v416, %v376
    %v506 = vmul.f32 %v416, %v377
    %v507 = vmul.f32 %v416, %v378
    %v508 = vmul.f32 %v416, %v379
    %v509 = vmul.f32 %v416, %v380
    %v510 = vmul.f32 %v416, %v381
    %v511 = vmul.f32 %v416, %v382
    %v512 = vmul.f32 %v416, %v383
    %v513 = vmul.f32 %v416, %v384
    %v514 = vmul.f32 %v416, %v385
    %v515 = vmul.f32 %v416, %v386
    %v516 = vmul.f32 %v416, %v387
    %v517 = vmul.f32 %v416, %v388
    %v518 = vmul.f32 %v416, %v389
    %v519 = vmul.f32 %v416, %v390
    %v520 = vmul.f32 %v416, %v391
    %v521 = vmul.f32 %v416, %v392
    %v522 = vmul.f32 %v416, %v393
    %v523 = vmul.f32 %v416, %v394
    %v524 = vmul.f32 %v416, %v395
    %v525 = vmul.f32 %v416, %v396
    %v526 = vmul.f32 %v416, %v397
    %v527 = vmul.f32 %v416, %v398
    %v528 = vmul.f32 %v416, %v399
    %v529 = vmul.f32 %v416, %v400
    %v530 = vmul.f32 %v416, %v401
    %v531 = vmul.f32 %v416, %v402
    %v532 = vmul.f32 %v416, %v403
    %v533 = vmul.f32 %v416, %v404
    %v534 = vmul.f32 %v416, %v405
    %v535 = vmul.f32 %v416, %v406
    %v536 = vmul.f32 %v416, %v407
    %v537 = vmul.f32 %v416, %v408
    %v538 = vmul.f32 %v416, %v409
    %v539 = vmul.f32 %v416, %v410
    %v540 = vmul.f32 %v416, %v411
    %v541 = vmul.f32 %v416, %v412
    %v542 = vmul.f32 %v416, %v413
    %v543 = vmul.f32 %v416, %v414
    %v544 = vmul.f32 %v416, %v415
    %v545 = vadd.f32 %v158, %v417
    %v546 = vadd.f32 %v159, %v418
    %v547 = vadd.f32 %v160, %v419
    %v548 = vadd.f32 %v161, %v420
    %v549 = vadd.f32 %v162, %v421
    %v550 = vadd.f32 %v163, %v422
    %v551 = vadd.f32 %v164, %v423
    %v552 = vadd.f32 %v165, %v424
    %v553 = vadd.f32 %v166, %v425
    %v554 = vadd.f32 %v167, %v426
    %v555 = vadd.f32 %v168, %v427
    %v556 = vadd.f32 %v169, %v428
    %v557 = vadd.f32 %v170, %v429
    %v558 = vadd.f32 %v171, %v430
    %v559 = vadd.f32 %v172, %v431
    %v560 = vadd.f32 %v173, %v432
    %v561 = vadd.f32 %v174, %v433
    %v562 = vadd.f32 %v175, %v434
    %v563 = vadd.f32 %v176, %v435
    %v564 = vadd.f32 %v177, %v436
    %v565 = vadd.f32 %v178, %v437
    %v566 = vadd.f32 %v179, %v438
    %v567 = vadd.f32 %v180, %v439
    %v568 = vadd.f32 %v181, %v440
    %v569 = vadd.f32 %v182, %v441
    %v570 = vadd.f32 %v183, %v442
    %v571 = vadd.f32 %v184, %v443
    %v572 = vadd.f32 %v185, %v444
    %v573 = vadd.f32 %v186, %v445
    %v574 = vadd.f32 %v187, %v446
    %v575 = vadd.f32 %v188, %v447
    %v576 = vadd.f32 %v189, %v448
    %v577 = vadd.f32 %v190, %v449
    %v578 = vadd.f32 %v191, %v450
    %v579 = vadd.f32 %v192, %v451
    %v580 = vadd.f32 %v193, %v452
    %v581 = vadd.f32 %v194, %v453
    %v582 = vadd.f32 %v195, %v454
    %v583 = vadd.f32 %v196, %v455
    %v584 = vadd.f32 %v197, %v456
    %v585 = vadd.f32 %v198, %v457
    %v586 = vadd.f32 %v199, %v458
    %v587 = vadd.f32 %v200, %v459
    %v588 = vadd.f32 %v201, %v460
    %v589 = vadd.f32 %v202, %v461
    %v590 = vadd.f32 %v203, %v462
    %v591 = vadd.f32 %v204, %v463
    %v592 = vadd.f32 %v205, %v464
    %v593 = vadd.f32 %v206, %v465
    %v594 = vadd.f32 %v207, %v466
    %v595 = vadd.f32 %v208, %v467
    %v596 = vadd.f32 %v209, %v468
    %v597 = vadd.f32 %v210, %v469
    %v598 = vadd.f32 %v211, %v470
    %v599 = vadd.f32 %v212, %v471
    %v600 = vadd.f32 %v213, %v472
    %v601 = vadd.f32 %v214, %v473
    %v602 = vadd.f32 %v215, %v474
    %v603 = vadd.f32 %v216, %v475
    %v604 = vadd.f32 %v217, %v476
    %v605 = vadd.f32 %v218, %v477
    %v606 = vadd.f32 %v219, %v478
    %v607 = vadd.f32 %v220, %v479
    %v608 = vadd.f32 %v221, %v480
    %v609 = vadd.f32 %v222, %v481
    %v610 = vadd.f32 %v223, %v482
    %v611 = vadd.f32 %v224, %v483
    %v612 = vadd.f32 %v225, %v484
    %v613 = vadd.f32 %v226, %v485
    %v614 = vadd.f32 %v227, %v486
    %v615 = vadd.f32 %v228, %v487
    %v616 = vadd.f32 %v229, %v488
    %v617 = vadd.f32 %v230, %v489
    %v618 = vadd.f32 %v231, %v490
    %v619 = vadd.f32 %v232, %v491
    %v620 = vadd.f32 %v233, %v492
    %v621 = vadd.f32 %v234, %v493
    %v622 = vadd.f32 %v235, %v494
    %v623 = vadd.f32 %v236, %v495
    %v624 = vadd.f32 %v237, %v496
    %v625 = vadd.f32 %v238, %v497
    %v626 = vadd.f32 %v239, %v498
    %v627 = vadd.f32 %v240, %v499
    %v628 = vadd.f32 %v241, %v500
    %v629 = vadd.f32 %v242, %v501
    %v630 = vadd.f32 %v243, %v502
    %v631 = vadd.f32 %v244, %v503
    %v632 = vadd.f32 %v245, %v504
    %v633 = vadd.f32 %v246, %v505
    %v634 = vadd.f32 %v247, %v506
    %v635 = vadd.f32 %v248, %v507
    %v636 = vadd.f32 %v249, %v508
    %v637 = vadd.f32 %v250, %v509
    %v638 = vadd.f32 %v251, %v510
    %v639 = vadd.f32 %v252, %v511
    %v640 = vadd.f32 %v253, %v512
    %v641 = vadd.f32 %v254, %v513
    %v642 = vadd.f32 %v255, %v514
    %v643 = vadd.f32 %v256, %v515
    %v644 = vadd.f32 %v257, %v516
    %v645 = vadd.f32 %v258, %v517
    %v646 = vadd.f32 %v259, %v518
    %v647 = vadd.f32 %v260, %v519
    %v648 = vadd.f32 %v261, %v520
    %v649 = vadd.f32 %v262, %v521
    %v650 = vadd.f32 %v263, %v522
    %v651 = vadd.f32 %v264, %v523
    %v652 = vadd.f32 %v265, %v524
    %v653 = vadd.f32 %v266, %v525
    %v654 = vadd.f32 %v267, %v526
    %v655 = vadd.f32 %v268, %v527
    %v656 = vadd.f32 %v269, %v528
    %v657 = vadd.f32 %v270, %v529
    %v658 = vadd.f32 %v271, %v530
    %v659 = vadd.f32 %v272, %v531
    %v660 = vadd.f32 %v273, %v532
    %v661 = vadd.f32 %v274, %v533
    %v662 = vadd.f32 %v275, %v534
    %v663 = vadd.f32 %v276, %v535
    %v664 = vadd.f32 %v277, %v536
    %v665 = vadd.f32 %v278, %v537
    %v666 = vadd.f32 %v279, %v538
    %v667 = vadd.f32 %v280, %v539
    %v668 = vadd.f32 %v281, %v540
    %v669 = vadd.f32 %v282, %v541
    %v670 = vadd.f32 %v283, %v542
    %v671 = vadd.f32 %v284, %v543
    %v672 = vadd.f32 %v285, %v544
    %s673 = sld [smem:[#allocation3 + $0x2]]
    %s674 = scalar_lea.vmem [#allocation4], 2048
    %v675 = vld [vmem:[%s674] sm:$0xff]
    %v676 = vld [vmem:[%s674 + $0x8] sm:$0xff]
    %v677 = vld [vmem:[%s674 + $0x10] sm:$0xff]
    %v678 = vld [vmem:[%s674 + $0x18] sm:$0xff]
    %v679 = vld [vmem:[%s674 + $0x20] sm:$0xff]
    %v680 = vld [vmem:[%s674 + $0x28] sm:$0xff]
    %v681 = vld [vmem:[%s674 + $0x30] sm:$0xff]
    %v682 = vld [vmem:[%s674 + $0x38] sm:$0xff]
    %v683 = vld [vmem:[%s674 + $0x40] sm:$0xff]
    %v684 = vld [vmem:[%s674 + $0x48] sm:$0xff]
    %v685 = vld [vmem:[%s674 + $0x50] sm:$0xff]
    %v686 = vld [vmem:[%s674 + $0x58] sm:$0xff]
    %v687 = vld [vmem:[%s674 + $0x60] sm:$0xff]
    %v688 = vld [vmem:[%s674 + $0x68] sm:$0xff]
    %v689 = vld [vmem:[%s674 + $0x70] sm:$0xff]
    %v690 = vld [vmem:[%s674 + $0x78] sm:$0xff]
    %v691 = vld [vmem:[%s674 + $0x80] sm:$0xff]
    %v692 = vld [vmem:[%s674 + $0x88] sm:$0xff]
    %v693 = vld [vmem:[%s674 + $0x90] sm:$0xff]
    %v694 = vld [vmem:[%s674 + $0x98] sm:$0xff]
    %v695 = vld [vmem:[%s674 + $0xa0] sm:$0xff]
    %v696 = vld [vmem:[%s674 + $0xa8] sm:$0xff]
    %v697 = vld [vmem:[%s674 + $0xb0] sm:$0xff]
    %v698 = vld [vmem:[%s674 + $0xb8] sm:$0xff]
    %v699 = vld [vmem:[%s674 + $0xc0] sm:$0xff]
    %v700 = vld [vmem:[%s674 + $0xc8] sm:$0xff]
    %v701 = vld [vmem:[%s674 + $0xd0] sm:$0xff]
    %v702 = vld [vmem:[%s674 + $0xd8] sm:$0xff]
    %v703 = vld [vmem:[%s674 + $0xe0] sm:$0xff]
    %v704 = vld [vmem:[%s674 + $0xe8] sm:$0xff]
    %v705 = vld [vmem:[%s674 + $0xf0] sm:$0xff]
    %v706 = vld [vmem:[%s674 + $0xf8] sm:$0xff]
    %v707 = vld [vmem:[%s674 + $0x100] sm:$0xff]
    %v708 = vld [vmem:[%s674 + $0x108] sm:$0xff]
    %v709 = vld [vmem:[%s674 + $0x110] sm:$0xff]
    %v710 = vld [vmem:[%s674 + $0x118] sm:$0xff]
    %v711 = vld [vmem:[%s674 + $0x120] sm:$0xff]
    %v712 = vld [vmem:[%s674 + $0x128] sm:$0xff]
    %v713 = vld [vmem:[%s674 + $0x130] sm:$0xff]
    %v714 = vld [vmem:[%s674 + $0x138] sm:$0xff]
    %v715 = vld [vmem:[%s674 + $0x140] sm:$0xff]
    %v716 = vld [vmem:[%s674 + $0x148] sm:$0xff]
    %v717 = vld [vmem:[%s674 + $0x150] sm:$0xff]
    %v718 = vld [vmem:[%s674 + $0x158] sm:$0xff]
    %v719 = vld [vmem:[%s674 + $0x160] sm:$0xff]
    %v720 = vld [vmem:[%s674 + $0x168] sm:$0xff]
    %v721 = vld [vmem:[%s674 + $0x170] sm:$0xff]
    %v722 = vld [vmem:[%s674 + $0x178] sm:$0xff]
    %v723 = vld [vmem:[%s674 + $0x180] sm:$0xff]
    %v724 = vld [vmem:[%s674 + $0x188] sm:$0xff]
    %v725 = vld [vmem:[%s674 + $0x190] sm:$0xff]
    %v726 = vld [vmem:[%s674 + $0x198] sm:$0xff]
    %v727 = vld [vmem:[%s674 + $0x1a0] sm:$0xff]
    %v728 = vld [vmem:[%s674 + $0x1a8] sm:$0xff]
    %v729 = vld [vmem:[%s674 + $0x1b0] sm:$0xff]
    %v730 = vld [vmem:[%s674 + $0x1b8] sm:$0xff]
    %v731 = vld [vmem:[%s674 + $0x1c0] sm:$0xff]
    %v732 = vld [vmem:[%s674 + $0x1c8] sm:$0xff]
    %v733 = vld [vmem:[%s674 + $0x1d0] sm:$0xff]
    %v734 = vld [vmem:[%s674 + $0x1d8] sm:$0xff]
    %v735 = vld [vmem:[%s674 + $0x1e0] sm:$0xff]
    %v736 = vld [vmem:[%s674 + $0x1e8] sm:$0xff]
    %v737 = vld [vmem:[%s674 + $0x1f0] sm:$0xff]
    %v738 = vld [vmem:[%s674 + $0x1f8] sm:$0xff]
    %v739 = vld [vmem:[%s674 + $0x200] sm:$0xff]
    %v740 = vld [vmem:[%s674 + $0x208] sm:$0xff]
    %v741 = vld [vmem:[%s674 + $0x210] sm:$0xff]
    %v742 = vld [vmem:[%s674 + $0x218] sm:$0xff]
    %v743 = vld [vmem:[%s674 + $0x220] sm:$0xff]
    %v744 = vld [vmem:[%s674 + $0x228] sm:$0xff]
    %v745 = vld [vmem:[%s674 + $0x230] sm:$0xff]
    %v746 = vld [vmem:[%s674 + $0x238] sm:$0xff]
    %v747 = vld [vmem:[%s674 + $0x240] sm:$0xff]
    %v748 = vld [vmem:[%s674 + $0x248] sm:$0xff]
    %v749 = vld [vmem:[%s674 + $0x250] sm:$0xff]
    %v750 = vld [vmem:[%s674 + $0x258] sm:$0xff]
    %v751 = vld [vmem:[%s674 + $0x260] sm:$0xff]
    %v752 = vld [vmem:[%s674 + $0x268] sm:$0xff]
    %v753 = vld [vmem:[%s674 + $0x270] sm:$0xff]
    %v754 = vld [vmem:[%s674 + $0x278] sm:$0xff]
    %v755 = vld [vmem:[%s674 + $0x280] sm:$0xff]
    %v756 = vld [vmem:[%s674 + $0x288] sm:$0xff]
    %v757 = vld [vmem:[%s674 + $0x290] sm:$0xff]
    %v758 = vld [vmem:[%s674 + $0x298] sm:$0xff]
    %v759 = vld [vmem:[%s674 + $0x2a0] sm:$0xff]
    %v760 = vld [vmem:[%s674 + $0x2a8] sm:$0xff]
    %v761 = vld [vmem:[%s674 + $0x2b0] sm:$0xff]
    %v762 = vld [vmem:[%s674 + $0x2b8] sm:$0xff]
    %v763 = vld [vmem:[%s674 + $0x2c0] sm:$0xff]
    %v764 = vld [vmem:[%s674 + $0x2c8] sm:$0xff]
    %v765 = vld [vmem:[%s674 + $0x2d0] sm:$0xff]
    %v766 = vld [vmem:[%s674 + $0x2d8] sm:$0xff]
    %v767 = vld [vmem:[%s674 + $0x2e0] sm:$0xff]
    %v768 = vld [vmem:[%s674 + $0x2e8] sm:$0xff]
    %v769 = vld [vmem:[%s674 + $0x2f0] sm:$0xff]
    %v770 = vld [vmem:[%s674 + $0x2f8] sm:$0xff]
    %v771 = vld [vmem:[%s674 + $0x300] sm:$0xff]
    %v772 = vld [vmem:[%s674 + $0x308] sm:$0xff]
    %v773 = vld [vmem:[%s674 + $0x310] sm:$0xff]
    %v774 = vld [vmem:[%s674 + $0x318] sm:$0xff]
    %v775 = vld [vmem:[%s674 + $0x320] sm:$0xff]
    %v776 = vld [vmem:[%s674 + $0x328] sm:$0xff]
    %v777 = vld [vmem:[%s674 + $0x330] sm:$0xff]
    %v778 = vld [vmem:[%s674 + $0x338] sm:$0xff]
    %v779 = vld [vmem:[%s674 + $0x340] sm:$0xff]
    %v780 = vld [vmem:[%s674 + $0x348] sm:$0xff]
    %v781 = vld [vmem:[%s674 + $0x350] sm:$0xff]
    %v782 = vld [vmem:[%s674 + $0x358] sm:$0xff]
    %v783 = vld [vmem:[%s674 + $0x360] sm:$0xff]
    %v784 = vld [vmem:[%s674 + $0x368] sm:$0xff]
    %v785 = vld [vmem:[%s674 + $0x370] sm:$0xff]
    %v786 = vld [vmem:[%s674 + $0x378] sm:$0xff]
    %v787 = vld [vmem:[%s674 + $0x380] sm:$0xff]
    %v788 = vld [vmem:[%s674 + $0x388] sm:$0xff]
    %v789 = vld [vmem:[%s674 + $0x390] sm:$0xff]
    %v790 = vld [vmem:[%s674 + $0x398] sm:$0xff]
    %v791 = vld [vmem:[%s674 + $0x3a0] sm:$0xff]
    %v792 = vld [vmem:[%s674 + $0x3a8] sm:$0xff]
    %v793 = vld [vmem:[%s674 + $0x3b0] sm:$0xff]
    %v794 = vld [vmem:[%s674 + $0x3b8] sm:$0xff]
    %v795 = vld [vmem:[%s674 + $0x3c0] sm:$0xff]
    %v796 = vld [vmem:[%s674 + $0x3c8] sm:$0xff]
    %v797 = vld [vmem:[%s674 + $0x3d0] sm:$0xff]
    %v798 = vld [vmem:[%s674 + $0x3d8] sm:$0xff]
    %v799 = vld [vmem:[%s674 + $0x3e0] sm:$0xff]
    %v800 = vld [vmem:[%s674 + $0x3e8] sm:$0xff]
    %v801 = vld [vmem:[%s674 + $0x3f0] sm:$0xff]
    %v802 = vld [vmem:[%s674 + $0x3f8] sm:$0xff]
    %v803 = vstv %s673
    %v804 = vmul.f32 %v803, %v675
    %v805 = vmul.f32 %v803, %v676
    %v806 = vmul.f32 %v803, %v677
    %v807 = vmul.f32 %v803, %v678
    %v808 = vmul.f32 %v803, %v679
    %v809 = vmul.f32 %v803, %v680
    %v810 = vmul.f32 %v803, %v681
    %v811 = vmul.f32 %v803, %v682
    %v812 = vmul.f32 %v803, %v683
    %v813 = vmul.f32 %v803, %v684
    %v814 = vmul.f32 %v803, %v685
    %v815 = vmul.f32 %v803, %v686
    %v816 = vmul.f32 %v803, %v687
    %v817 = vmul.f32 %v803, %v688
    %v818 = vmul.f32 %v803, %v689
    %v819 = vmul.f32 %v803, %v690
    %v820 = vmul.f32 %v803, %v691
    %v821 = vmul.f32 %v803, %v692
    %v822 = vmul.f32 %v803, %v693
    %v823 = vmul.f32 %v803, %v694
    %v824 = vmul.f32 %v803, %v695
    %v825 = vmul.f32 %v803, %v696
    %v826 = vmul.f32 %v803, %v697
    %v827 = vmul.f32 %v803, %v698
    %v828 = vmul.f32 %v803, %v699
    %v829 = vmul.f32 %v803, %v700
    %v830 = vmul.f32 %v803, %v701
    %v831 = vmul.f32 %v803, %v702
    %v832 = vmul.f32 %v803, %v703
    %v833 = vmul.f32 %v803, %v704
    %v834 = vmul.f32 %v803, %v705
    %v835 = vmul.f32 %v803, %v706
    %v836 = vmul.f32 %v803, %v707
    %v837 = vmul.f32 %v803, %v708
    %v838 = vmul.f32 %v803, %v709
    %v839 = vmul.f32 %v803, %v710
    %v840 = vmul.f32 %v803, %v711
    %v841 = vmul.f32 %v803, %v712
    %v842 = vmul.f32 %v803, %v713
    %v843 = vmul.f32 %v803, %v714
    %v844 = vmul.f32 %v803, %v715
    %v845 = vmul.f32 %v803, %v716
    %v846 = vmul.f32 %v803, %v717
    %v847 = vmul.f32 %v803, %v718
    %v848 = vmul.f32 %v803, %v719
    %v849 = vmul.f32 %v803, %v720
    %v850 = vmul.f32 %v803, %v721
    %v851 = vmul.f32 %v803, %v722
    %v852 = vmul.f32 %v803, %v723
    %v853 = vmul.f32 %v803, %v724
    %v854 = vmul.f32 %v803, %v725
    %v855 = vmul.f32 %v803, %v726
    %v856 = vmul.f32 %v803, %v727
    %v857 = vmul.f32 %v803, %v728
    %v858 = vmul.f32 %v803, %v729
    %v859 = vmul.f32 %v803, %v730
    %v860 = vmul.f32 %v803, %v731
    %v861 = vmul.f32 %v803, %v732
    %v862 = vmul.f32 %v803, %v733
    %v863 = vmul.f32 %v803, %v734
    %v864 = vmul.f32 %v803, %v735
    %v865 = vmul.f32 %v803, %v736
    %v866 = vmul.f32 %v803, %v737
    %v867 = vmul.f32 %v803, %v738
    %v868 = vmul.f32 %v803, %v739
    %v869 = vmul.f32 %v803, %v740
    %v870 = vmul.f32 %v803, %v741
    %v871 = vmul.f32 %v803, %v742
    %v872 = vmul.f32 %v803, %v743
    %v873 = vmul.f32 %v803, %v744
    %v874 = vmul.f32 %v803, %v745
    %v875 = vmul.f32 %v803, %v746
    %v876 = vmul.f32 %v803, %v747
    %v877 = vmul.f32 %v803, %v748
    %v878 = vmul.f32 %v803, %v749
    %v879 = vmul.f32 %v803, %v750
    %v880 = vmul.f32 %v803, %v751
    %v881 = vmul.f32 %v803, %v752
    %v882 = vmul.f32 %v803, %v753
    %v883 = vmul.f32 %v803, %v754
    %v884 = vmul.f32 %v803, %v755
    %v885 = vmul.f32 %v803, %v756
    %v886 = vmul.f32 %v803, %v757
    %v887 = vmul.f32 %v803, %v758
    %v888 = vmul.f32 %v803, %v759
    %v889 = vmul.f32 %v803, %v760
    %v890 = vmul.f32 %v803, %v761
    %v891 = vmul.f32 %v803, %v762
    %v892 = vmul.f32 %v803, %v763
    %v893 = vmul.f32 %v803, %v764
    %v894 = vmul.f32 %v803, %v765
    %v895 = vmul.f32 %v803, %v766
    %v896 = vmul.f32 %v803, %v767
    %v897 = vmul.f32 %v803, %v768
    %v898 = vmul.f32 %v803, %v769
    %v899 = vmul.f32 %v803, %v770
    %v900 = vmul.f32 %v803, %v771
    %v901 = vmul.f32 %v803, %v772
    %v902 = vmul.f32 %v803, %v773
    %v903 = vmul.f32 %v803, %v774
    %v904 = vmul.f32 %v803, %v775
    %v905 = vmul.f32 %v803, %v776
    %v906 = vmul.f32 %v803, %v777
    %v907 = vmul.f32 %v803, %v778
    %v908 = vmul.f32 %v803, %v779
    %v909 = vmul.f32 %v803, %v780
    %v910 = vmul.f32 %v803, %v781
    %v911 = vmul.f32 %v803, %v782
    %v912 = vmul.f32 %v803, %v783
    %v913 = vmul.f32 %v803, %v784
    %v914 = vmul.f32 %v803, %v785
    %v915 = vmul.f32 %v803, %v786
    %v916 = vmul.f32 %v803, %v787
    %v917 = vmul.f32 %v803, %v788
    %v918 = vmul.f32 %v803, %v789
    %v919 = vmul.f32 %v803, %v790
    %v920 = vmul.f32 %v803, %v791
    %v921 = vmul.f32 %v803, %v792
    %v922 = vmul.f32 %v803, %v793
    %v923 = vmul.f32 %v803, %v794
    %v924 = vmul.f32 %v803, %v795
    %v925 = vmul.f32 %v803, %v796
    %v926 = vmul.f32 %v803, %v797
    %v927 = vmul.f32 %v803, %v798
    %v928 = vmul.f32 %v803, %v799
    %v929 = vmul.f32 %v803, %v800
    %v930 = vmul.f32 %v803, %v801
    %v931 = vmul.f32 %v803, %v802
    %v932 = vadd.f32 %v545, %v804
    %v933 = vadd.f32 %v546, %v805
    %v934 = vadd.f32 %v547, %v806
    %v935 = vadd.f32 %v548, %v807
    %v936 = vadd.f32 %v549, %v808
    %v937 = vadd.f32 %v550, %v809
    %v938 = vadd.f32 %v551, %v810
    %v939 = vadd.f32 %v552, %v811
    %v940 = vadd.f32 %v553, %v812
    %v941 = vadd.f32 %v554, %v813
    %v942 = vadd.f32 %v555, %v814
    %v943 = vadd.f32 %v556, %v815
    %v944 = vadd.f32 %v557, %v816
    %v945 = vadd.f32 %v558, %v817
    %v946 = vadd.f32 %v559, %v818
    %v947 = vadd.f32 %v560, %v819
    %v948 = vadd.f32 %v561, %v820
    %v949 = vadd.f32 %v562, %v821
    %v950 = vadd.f32 %v563, %v822
    %v951 = vadd.f32 %v564, %v823
    %v952 = vadd.f32 %v565, %v824
    %v953 = vadd.f32 %v566, %v825
    %v954 = vadd.f32 %v567, %v826
    %v955 = vadd.f32 %v568, %v827
    %v956 = vadd.f32 %v569, %v828
    %v957 = vadd.f32 %v570, %v829
    %v958 = vadd.f32 %v571, %v830
    %v959 = vadd.f32 %v572, %v831
    %v960 = vadd.f32 %v573, %v832
    %v961 = vadd.f32 %v574, %v833
    %v962 = vadd.f32 %v575, %v834
    %v963 = vadd.f32 %v576, %v835
    %v964 = vadd.f32 %v577, %v836
    %v965 = vadd.f32 %v578, %v837
    %v966 = vadd.f32 %v579, %v838
    %v967 = vadd.f32 %v580, %v839
    %v968 = vadd.f32 %v581, %v840
    %v969 = vadd.f32 %v582, %v841
    %v970 = vadd.f32 %v583, %v842
    %v971 = vadd.f32 %v584, %v843
    %v972 = vadd.f32 %v585, %v844
    %v973 = vadd.f32 %v586, %v845
    %v974 = vadd.f32 %v587, %v846
    %v975 = vadd.f32 %v588, %v847
    %v976 = vadd.f32 %v589, %v848
    %v977 = vadd.f32 %v590, %v849
    %v978 = vadd.f32 %v591, %v850
    %v979 = vadd.f32 %v592, %v851
    %v980 = vadd.f32 %v593, %v852
    %v981 = vadd.f32 %v594, %v853
    %v982 = vadd.f32 %v595, %v854
    %v983 = vadd.f32 %v596, %v855
    %v984 = vadd.f32 %v597, %v856
    %v985 = vadd.f32 %v598, %v857
    %v986 = vadd.f32 %v599, %v858
    %v987 = vadd.f32 %v600, %v859
    %v988 = vadd.f32 %v601, %v860
    %v989 = vadd.f32 %v602, %v861
    %v990 = vadd.f32 %v603, %v862
    %v991 = vadd.f32 %v604, %v863
    %v992 = vadd.f32 %v605, %v864
    %v993 = vadd.f32 %v606, %v865
    %v994 = vadd.f32 %v607, %v866
    %v995 = vadd.f32 %v608, %v867
    %v996 = vadd.f32 %v609, %v868
    %v997 = vadd.f32 %v610, %v869
    %v998 = vadd.f32 %v611, %v870
    %v999 = vadd.f32 %v612, %v871
    %v1000 = vadd.f32 %v613, %v872
    %v1001 = vadd.f32 %v614, %v873
    %v1002 = vadd.f32 %v615, %v874
    %v1003 = vadd.f32 %v616, %v875
    %v1004 = vadd.f32 %v617, %v876
    %v1005 = vadd.f32 %v618, %v877
    %v1006 = vadd.f32 %v619, %v878
    %v1007 = vadd.f32 %v620, %v879
    %v1008 = vadd.f32 %v621, %v880
    %v1009 = vadd.f32 %v622, %v881
    %v1010 = vadd.f32 %v623, %v882
    %v1011 = vadd.f32 %v624, %v883
    %v1012 = vadd.f32 %v625, %v884
    %v1013 = vadd.f32 %v626, %v885
    %v1014 = vadd.f32 %v627, %v886
    %v1015 = vadd.f32 %v628, %v887
    %v1016 = vadd.f32 %v629, %v888
    %v1017 = vadd.f32 %v630, %v889
    %v1018 = vadd.f32 %v631, %v890
    %v1019 = vadd.f32 %v632, %v891
    %v1020 = vadd.f32 %v633, %v892
    %v1021 = vadd.f32 %v634, %v893
    %v1022 = vadd.f32 %v635, %v894
    %v1023 = vadd.f32 %v636, %v895
    %v1024 = vadd.f32 %v637, %v896
    %v1025 = vadd.f32 %v638, %v897
    %v1026 = vadd.f32 %v639, %v898
    %v1027 = vadd.f32 %v640, %v899
    %v1028 = vadd.f32 %v641, %v900
    %v1029 = vadd.f32 %v642, %v901
    %v1030 = vadd.f32 %v643, %v902
    %v1031 = vadd.f32 %v644, %v903
    %v1032 = vadd.f32 %v645, %v904
    %v1033 = vadd.f32 %v646, %v905
    %v1034 = vadd.f32 %v647, %v906
    %v1035 = vadd.f32 %v648, %v907
    %v1036 = vadd.f32 %v649, %v908
    %v1037 = vadd.f32 %v650, %v909
    %v1038 = vadd.f32 %v651, %v910
    %v1039 = vadd.f32 %v652, %v911
    %v1040 = vadd.f32 %v653, %v912
    %v1041 = vadd.f32 %v654, %v913
    %v1042 = vadd.f32 %v655, %v914
    %v1043 = vadd.f32 %v656, %v915
    %v1044 = vadd.f32 %v657, %v916
    %v1045 = vadd.f32 %v658, %v917
    %v1046 = vadd.f32 %v659, %v918
    %v1047 = vadd.f32 %v660, %v919
    %v1048 = vadd.f32 %v661, %v920
    %v1049 = vadd.f32 %v662, %v921
    %v1050 = vadd.f32 %v663, %v922
    %v1051 = vadd.f32 %v664, %v923
    %v1052 = vadd.f32 %v665, %v924
    %v1053 = vadd.f32 %v666, %v925
    %v1054 = vadd.f32 %v667, %v926
    %v1055 = vadd.f32 %v668, %v927
    %v1056 = vadd.f32 %v669, %v928
    %v1057 = vadd.f32 %v670, %v929
    %v1058 = vadd.f32 %v671, %v930
    %v1059 = vadd.f32 %v672, %v931
    %v1060 = vpack.c.bf16 %v933, %v932
    %v1061 = vpack.c.bf16 %v935, %v934
    %v1062 = vpack.c.bf16 %v937, %v936
    %v1063 = vpack.c.bf16 %v939, %v938
    %v1064 = vpack.c.bf16 %v941, %v940
    %v1065 = vpack.c.bf16 %v943, %v942
    %v1066 = vpack.c.bf16 %v945, %v944
    %v1067 = vpack.c.bf16 %v947, %v946
    %v1068 = vpack.c.bf16 %v949, %v948
    %v1069 = vpack.c.bf16 %v951, %v950
    %v1070 = vpack.c.bf16 %v953, %v952
    %v1071 = vpack.c.bf16 %v955, %v954
    %v1072 = vpack.c.bf16 %v957, %v956
    %v1073 = vpack.c.bf16 %v959, %v958
    %v1074 = vpack.c.bf16 %v961, %v960
    %v1075 = vpack.c.bf16 %v963, %v962
    %v1076 = vpack.c.bf16 %v965, %v964
    %v1077 = vpack.c.bf16 %v967, %v966
    %v1078 = vpack.c.bf16 %v969, %v968
    %v1079 = vpack.c.bf16 %v971, %v970
    %v1080 = vpack.c.bf16 %v973, %v972
    %v1081 = vpack.c.bf16 %v975, %v974
    %v1082 = vpack.c.bf16 %v977, %v976
    %v1083 = vpack.c.bf16 %v979, %v978
    %v1084 = vpack.c.bf16 %v981, %v980
    %v1085 = vpack.c.bf16 %v983, %v982
    %v1086 = vpack.c.bf16 %v985, %v984
    %v1087 = vpack.c.bf16 %v987, %v986
    %v1088 = vpack.c.bf16 %v989, %v988
    %v1089 = vpack.c.bf16 %v991, %v990
    %v1090 = vpack.c.bf16 %v993, %v992
    %v1091 = vpack.c.bf16 %v995, %v994
    %v1092 = vpack.c.bf16 %v997, %v996
    %v1093 = vpack.c.bf16 %v999, %v998
    %v1094 = vpack.c.bf16 %v1001, %v1000
    %v1095 = vpack.c.bf16 %v1003, %v1002
    %v1096 = vpack.c.bf16 %v1005, %v1004
    %v1097 = vpack.c.bf16 %v1007, %v1006
    %v1098 = vpack.c.bf16 %v1009, %v1008
    %v1099 = vpack.c.bf16 %v1011, %v1010
    %v1100 = vpack.c.bf16 %v1013, %v1012
    %v1101 = vpack.c.bf16 %v1015, %v1014
    %v1102 = vpack.c.bf16 %v1017, %v1016
    %v1103 = vpack.c.bf16 %v1019, %v1018
    %v1104 = vpack.c.bf16 %v1021, %v1020
    %v1105 = vpack.c.bf16 %v1023, %v1022
    %v1106 = vpack.c.bf16 %v1025, %v1024
    %v1107 = vpack.c.bf16 %v1027, %v1026
    %v1108 = vpack.c.bf16 %v1029, %v1028
    %v1109 = vpack.c.bf16 %v1031, %v1030
    %v1110 = vpack.c.bf16 %v1033, %v1032
    %v1111 = vpack.c.bf16 %v1035, %v1034
    %v1112 = vpack.c.bf16 %v1037, %v1036
    %v1113 = vpack.c.bf16 %v1039, %v1038
    %v1114 = vpack.c.bf16 %v1041, %v1040
    %v1115 = vpack.c.bf16 %v1043, %v1042
    %v1116 = vpack.c.bf16 %v1045, %v1044
    %v1117 = vpack.c.bf16 %v1047, %v1046
    %v1118 = vpack.c.bf16 %v1049, %v1048
    %v1119 = vpack.c.bf16 %v1051, %v1050
    %v1120 = vpack.c.bf16 %v1053, %v1052
    %v1121 = vpack.c.bf16 %v1055, %v1054
    %v1122 = vpack.c.bf16 %v1057, %v1056
    %v1123 = vpack.c.bf16 %v1059, %v1058
    %v1188 = vunpack.c.l.b16 %v1060
    %v1189 = vunpack.c.h.b16 %v1060
    %v1190 = vunpack.c.l.b16 %v1061
    %v1191 = vunpack.c.h.b16 %v1061
    %v1192 = vunpack.c.l.b16 %v1062
    %v1193 = vunpack.c.h.b16 %v1062
    %v1194 = vunpack.c.l.b16 %v1063
    %v1195 = vunpack.c.h.b16 %v1063
    %v1196 = vunpack.c.l.b16 %v1064
    %v1197 = vunpack.c.h.b16 %v1064
    %v1198 = vunpack.c.l.b16 %v1065
    %v1199 = vunpack.c.h.b16 %v1065
    %v1200 = vunpack.c.l.b16 %v1066
    %v1201 = vunpack.c.h.b16 %v1066
    %v1202 = vunpack.c.l.b16 %v1067
    %v1203 = vunpack.c.h.b16 %v1067
    %v1204 = vunpack.c.l.b16 %v1068
    %v1205 = vunpack.c.h.b16 %v1068
    %v1206 = vunpack.c.l.b16 %v1069
    %v1207 = vunpack.c.h.b16 %v1069
    %v1208 = vunpack.c.l.b16 %v1070
    %v1209 = vunpack.c.h.b16 %v1070
    %v1210 = vunpack.c.l.b16 %v1071
    %v1211 = vunpack.c.h.b16 %v1071
    %v1212 = vunpack.c.l.b16 %v1072
    %v1213 = vunpack.c.h.b16 %v1072
    %v1214 = vunpack.c.l.b16 %v1073
    %v1215 = vunpack.c.h.b16 %v1073
    %v1216 = vunpack.c.l.b16 %v1074
    %v1217 = vunpack.c.h.b16 %v1074
    %v1218 = vunpack.c.l.b16 %v1075
    %v1219 = vunpack.c.h.b16 %v1075
    %v1220 = vunpack.c.l.b16 %v1076
    %v1221 = vunpack.c.h.b16 %v1076
    %v1222 = vunpack.c.l.b16 %v1077
    %v1223 = vunpack.c.h.b16 %v1077
    %v1224 = vunpack.c.l.b16 %v1078
    %v1225 = vunpack.c.h.b16 %v1078
    %v1226 = vunpack.c.l.b16 %v1079
    %v1227 = vunpack.c.h.b16 %v1079
    %v1228 = vunpack.c.l.b16 %v1080
    %v1229 = vunpack.c.h.b16 %v1080
    %v1230 = vunpack.c.l.b16 %v1081
    %v1231 = vunpack.c.h.b16 %v1081
    %v1232 = vunpack.c.l.b16 %v1082
    %v1233 = vunpack.c.h.b16 %v1082
    %v1234 = vunpack.c.l.b16 %v1083
    %v1235 = vunpack.c.h.b16 %v1083
    %v1236 = vunpack.c.l.b16 %v1084
    %v1237 = vunpack.c.h.b16 %v1084
    %v1238 = vunpack.c.l.b16 %v1085
    %v1239 = vunpack.c.h.b16 %v1085
    %v1240 = vunpack.c.l.b16 %v1086
    %v1241 = vunpack.c.h.b16 %v1086
    %v1242 = vunpack.c.l.b16 %v1087
    %v1243 = vunpack.c.h.b16 %v1087
    %v1244 = vunpack.c.l.b16 %v1088
    %v1245 = vunpack.c.h.b16 %v1088
    %v1246 = vunpack.c.l.b16 %v1089
    %v1247 = vunpack.c.h.b16 %v1089
    %v1248 = vunpack.c.l.b16 %v1090
    %v1249 = vunpack.c.h.b16 %v1090
    %v1250 = vunpack.c.l.b16 %v1091
    %v1251 = vunpack.c.h.b16 %v1091
    %v1252 = vunpack.c.l.b16 %v1092
    %v1253 = vunpack.c.h.b16 %v1092
    %v1254 = vunpack.c.l.b16 %v1093
    %v1255 = vunpack.c.h.b16 %v1093
    %v1256 = vunpack.c.l.b16 %v1094
    %v1257 = vunpack.c.h.b16 %v1094
    %v1258 = vunpack.c.l.b16 %v1095
    %v1259 = vunpack.c.h.b16 %v1095
    %v1260 = vunpack.c.l.b16 %v1096
    %v1261 = vunpack.c.h.b16 %v1096
    %v1262 = vunpack.c.l.b16 %v1097
    %v1263 = vunpack.c.h.b16 %v1097
    %v1264 = vunpack.c.l.b16 %v1098
    %v1265 = vunpack.c.h.b16 %v1098
    %v1266 = vunpack.c.l.b16 %v1099
    %v1267 = vunpack.c.h.b16 %v1099
    %v1268 = vunpack.c.l.b16 %v1100
    %v1269 = vunpack.c.h.b16 %v1100
    %v1270 = vunpack.c.l.b16 %v1101
    %v1271 = vunpack.c.h.b16 %v1101
    %v1272 = vunpack.c.l.b16 %v1102
    %v1273 = vunpack.c.h.b16 %v1102
    %v1274 = vunpack.c.l.b16 %v1103
    %v1275 = vunpack.c.h.b16 %v1103
    %v1276 = vunpack.c.l.b16 %v1104
    %v1277 = vunpack.c.h.b16 %v1104
    %v1278 = vunpack.c.l.b16 %v1105
    %v1279 = vunpack.c.h.b16 %v1105
    %v1280 = vunpack.c.l.b16 %v1106
    %v1281 = vunpack.c.h.b16 %v1106
    %v1282 = vunpack.c.l.b16 %v1107
    %v1283 = vunpack.c.h.b16 %v1107
    %v1284 = vunpack.c.l.b16 %v1108
    %v1285 = vunpack.c.h.b16 %v1108
    %v1286 = vunpack.c.l.b16 %v1109
    %v1287 = vunpack.c.h.b16 %v1109
    %v1288 = vunpack.c.l.b16 %v1110
    %v1289 = vunpack.c.h.b16 %v1110
    %v1290 = vunpack.c.l.b16 %v1111
    %v1291 = vunpack.c.h.b16 %v1111
    %v1292 = vunpack.c.l.b16 %v1112
    %v1293 = vunpack.c.h.b16 %v1112
    %v1294 = vunpack.c.l.b16 %v1113
    %v1295 = vunpack.c.h.b16 %v1113
    %v1296 = vunpack.c.l.b16 %v1114
    %v1297 = vunpack.c.h.b16 %v1114
    %v1298 = vunpack.c.l.b16 %v1115
    %v1299 = vunpack.c.h.b16 %v1115
    %v1300 = vunpack.c.l.b16 %v1116
    %v1301 = vunpack.c.h.b16 %v1116
    %v1302 = vunpack.c.l.b16 %v1117
    %v1303 = vunpack.c.h.b16 %v1117
    %v1304 = vunpack.c.l.b16 %v1118
    %v1305 = vunpack.c.h.b16 %v1118
    %v1306 = vunpack.c.l.b16 %v1119
    %v1307 = vunpack.c.h.b16 %v1119
    %v1308 = vunpack.c.l.b16 %v1120
    %v1309 = vunpack.c.h.b16 %v1120
    %v1310 = vunpack.c.l.b16 %v1121
    %v1311 = vunpack.c.h.b16 %v1121
    %v1312 = vunpack.c.l.b16 %v1122
    %v1313 = vunpack.c.h.b16 %v1122
    %v1314 = vunpack.c.l.b16 %v1123
    %v1315 = vunpack.c.h.b16 %v1123
    %v1316 = vpack.c.b16 %v1188, %v1188
    %v1317 = vpack.c.b16 %v1189, %v1189
    %v1318 = vpack.c.b16 %v1190, %v1190
    %v1319 = vpack.c.b16 %v1191, %v1191
    %v1320 = vpack.c.b16 %v1192, %v1192
    %v1321 = vpack.c.b16 %v1193, %v1193
    %v1322 = vpack.c.b16 %v1194, %v1194
    %v1323 = vpack.c.b16 %v1195, %v1195
    %v1324 = vpack.c.b16 %v1196, %v1196
    %v1325 = vpack.c.b16 %v1197, %v1197
    %v1326 = vpack.c.b16 %v1198, %v1198
    %v1327 = vpack.c.b16 %v1199, %v1199
    %v1328 = vpack.c.b16 %v1200, %v1200
    %v1329 = vpack.c.b16 %v1201, %v1201
    %v1330 = vpack.c.b16 %v1202, %v1202
    %v1331 = vpack.c.b16 %v1203, %v1203
    %v1332 = vpack.c.b16 %v1204, %v1204
    %v1333 = vpack.c.b16 %v1205, %v1205
    %v1334 = vpack.c.b16 %v1206, %v1206
    %v1335 = vpack.c.b16 %v1207, %v1207
    %v1336 = vpack.c.b16 %v1208, %v1208
    %v1337 = vpack.c.b16 %v1209, %v1209
    %v1338 = vpack.c.b16 %v1210, %v1210
    %v1339 = vpack.c.b16 %v1211, %v1211
    %v1340 = vpack.c.b16 %v1212, %v1212
    %v1341 = vpack.c.b16 %v1213, %v1213
    %v1342 = vpack.c.b16 %v1214, %v1214
    %v1343 = vpack.c.b16 %v1215, %v1215
    %v1344 = vpack.c.b16 %v1216, %v1216
    %v1345 = vpack.c.b16 %v1217, %v1217
    %v1346 = vpack.c.b16 %v1218, %v1218
    %v1347 = vpack.c.b16 %v1219, %v1219
    %v1348 = vpack.c.b16 %v1220, %v1220
    %v1349 = vpack.c.b16 %v1221, %v1221
    %v1350 = vpack.c.b16 %v1222, %v1222
    %v1351 = vpack.c.b16 %v1223, %v1223
    %v1352 = vpack.c.b16 %v1224, %v1224
    %v1353 = vpack.c.b16 %v1225, %v1225
    %v1354 = vpack.c.b16 %v1226, %v1226
    %v1355 = vpack.c.b16 %v1227, %v1227
    %v1356 = vpack.c.b16 %v1228, %v1228
    %v1357 = vpack.c.b16 %v1229, %v1229
    %v1358 = vpack.c.b16 %v1230, %v1230
    %v1359 = vpack.c.b16 %v1231, %v1231
    %v1360 = vpack.c.b16 %v1232, %v1232
    %v1361 = vpack.c.b16 %v1233, %v1233
    %v1362 = vpack.c.b16 %v1234, %v1234
    %v1363 = vpack.c.b16 %v1235, %v1235
    %v1364 = vpack.c.b16 %v1236, %v1236
    %v1365 = vpack.c.b16 %v1237, %v1237
    %v1366 = vpack.c.b16 %v1238, %v1238
    %v1367 = vpack.c.b16 %v1239, %v1239
    %v1368 = vpack.c.b16 %v1240, %v1240
    %v1369 = vpack.c.b16 %v1241, %v1241
    %v1370 = vpack.c.b16 %v1242, %v1242
    %v1371 = vpack.c.b16 %v1243, %v1243
    %v1372 = vpack.c.b16 %v1244, %v1244
    %v1373 = vpack.c.b16 %v1245, %v1245
    %v1374 = vpack.c.b16 %v1246, %v1246
    %v1375 = vpack.c.b16 %v1247, %v1247
    %v1376 = vpack.c.b16 %v1248, %v1248
    %v1377 = vpack.c.b16 %v1249, %v1249
    %v1378 = vpack.c.b16 %v1250, %v1250
    %v1379 = vpack.c.b16 %v1251, %v1251
    %v1380 = vpack.c.b16 %v1252, %v1252
    %v1381 = vpack.c.b16 %v1253, %v1253
    %v1382 = vpack.c.b16 %v1254, %v1254
    %v1383 = vpack.c.b16 %v1255, %v1255
    %v1384 = vpack.c.b16 %v1256, %v1256
    %v1385 = vpack.c.b16 %v1257, %v1257
    %v1386 = vpack.c.b16 %v1258, %v1258
    %v1387 = vpack.c.b16 %v1259, %v1259
    %v1388 = vpack.c.b16 %v1260, %v1260
    %v1389 = vpack.c.b16 %v1261, %v1261
    %v1390 = vpack.c.b16 %v1262, %v1262
    %v1391 = vpack.c.b16 %v1263, %v1263
    %v1392 = vpack.c.b16 %v1264, %v1264
    %v1393 = vpack.c.b16 %v1265, %v1265
    %v1394 = vpack.c.b16 %v1266, %v1266
    %v1395 = vpack.c.b16 %v1267, %v1267
    %v1396 = vpack.c.b16 %v1268, %v1268
    %v1397 = vpack.c.b16 %v1269, %v1269
    %v1398 = vpack.c.b16 %v1270, %v1270
    %v1399 = vpack.c.b16 %v1271, %v1271
    %v1400 = vpack.c.b16 %v1272, %v1272
    %v1401 = vpack.c.b16 %v1273, %v1273
    %v1402 = vpack.c.b16 %v1274, %v1274
    %v1403 = vpack.c.b16 %v1275, %v1275
    %v1404 = vpack.c.b16 %v1276, %v1276
    %v1405 = vpack.c.b16 %v1277, %v1277
    %v1406 = vpack.c.b16 %v1278, %v1278
    %v1407 = vpack.c.b16 %v1279, %v1279
    %v1408 = vpack.c.b16 %v1280, %v1280
    %v1409 = vpack.c.b16 %v1281, %v1281
    %v1410 = vpack.c.b16 %v1282, %v1282
    %v1411 = vpack.c.b16 %v1283, %v1283
    %v1412 = vpack.c.b16 %v1284, %v1284
    %v1413 = vpack.c.b16 %v1285, %v1285
    %v1414 = vpack.c.b16 %v1286, %v1286
    %v1415 = vpack.c.b16 %v1287, %v1287
    %v1416 = vpack.c.b16 %v1288, %v1288
    %v1417 = vpack.c.b16 %v1289, %v1289
    %v1418 = vpack.c.b16 %v1290, %v1290
    %v1419 = vpack.c.b16 %v1291, %v1291
    %v1420 = vpack.c.b16 %v1292, %v1292
    %v1421 = vpack.c.b16 %v1293, %v1293
    %v1422 = vpack.c.b16 %v1294, %v1294
    %v1423 = vpack.c.b16 %v1295, %v1295
    %v1424 = vpack.c.b16 %v1296, %v1296
    %v1425 = vpack.c.b16 %v1297, %v1297
    %v1426 = vpack.c.b16 %v1298, %v1298
    %v1427 = vpack.c.b16 %v1299, %v1299
    %v1428 = vpack.c.b16 %v1300, %v1300
    %v1429 = vpack.c.b16 %v1301, %v1301
    %v1430 = vpack.c.b16 %v1302, %v1302
    %v1431 = vpack.c.b16 %v1303, %v1303
    %v1432 = vpack.c.b16 %v1304, %v1304
    %v1433 = vpack.c.b16 %v1305, %v1305
    %v1434 = vpack.c.b16 %v1306, %v1306
    %v1435 = vpack.c.b16 %v1307, %v1307
    %v1436 = vpack.c.b16 %v1308, %v1308
    %v1437 = vpack.c.b16 %v1309, %v1309
    %v1438 = vpack.c.b16 %v1310, %v1310
    %v1439 = vpack.c.b16 %v1311, %v1311
    %v1440 = vpack.c.b16 %v1312, %v1312
    %v1441 = vpack.c.b16 %v1313, %v1313
    %v1442 = vpack.c.b16 %v1314, %v1314
    %v1443 = vpack.c.b16 %v1315, %v1315
    %1572 = vst [vmem:[#allocation7] sm:$0xf] %v1316
    %1573 = vst [vmem:[#allocation7 + $0x4] sm:$0xf] %v1317
    %1574 = vst [vmem:[#allocation7 + $0x8] sm:$0xf] %v1318
    %1575 = vst [vmem:[#allocation7 + $0xc] sm:$0xf] %v1319
    %1576 = vst [vmem:[#allocation7 + $0x10] sm:$0xf] %v1320
    %1577 = vst [vmem:[#allocation7 + $0x14] sm:$0xf] %v1321
    %1578 = vst [vmem:[#allocation7 + $0x18] sm:$0xf] %v1322
    %1579 = vst [vmem:[#allocation7 + $0x1c] sm:$0xf] %v1323
    %1580 = vst [vmem:[#allocation7 + $0x20] sm:$0xf] %v1324
    %1581 = vst [vmem:[#allocation7 + $0x24] sm:$0xf] %v1325
    %1582 = vst [vmem:[#allocation7 + $0x28] sm:$0xf] %v1326
    %1583 = vst [vmem:[#allocation7 + $0x2c] sm:$0xf] %v1327
    %1584 = vst [vmem:[#allocation7 + $0x30] sm:$0xf] %v1328
    %1585 = vst [vmem:[#allocation7 + $0x34] sm:$0xf] %v1329
    %1586 = vst [vmem:[#allocation7 + $0x38] sm:$0xf] %v1330
    %1587 = vst [vmem:[#allocation7 + $0x3c] sm:$0xf] %v1331
    %1588 = vst [vmem:[#allocation7 + $0x40] sm:$0xf] %v1332
    %1589 = vst [vmem:[#allocation7 + $0x44] sm:$0xf] %v1333
    %1590 = vst [vmem:[#allocation7 + $0x48] sm:$0xf] %v1334
    %1591 = vst [vmem:[#allocation7 + $0x4c] sm:$0xf] %v1335
    %1592 = vst [vmem:[#allocation7 + $0x50] sm:$0xf] %v1336
    %1593 = vst [vmem:[#allocation7 + $0x54] sm:$0xf] %v1337
    %1594 = vst [vmem:[#allocation7 + $0x58] sm:$0xf] %v1338
    %1595 = vst [vmem:[#allocation7 + $0x5c] sm:$0xf] %v1339
    %1596 = vst [vmem:[#allocation7 + $0x60] sm:$0xf] %v1340
    %1597 = vst [vmem:[#allocation7 + $0x64] sm:$0xf] %v1341
    %1598 = vst [vmem:[#allocation7 + $0x68] sm:$0xf] %v1342
    %1599 = vst [vmem:[#allocation7 + $0x6c] sm:$0xf] %v1343
    %1600 = vst [vmem:[#allocation7 + $0x70] sm:$0xf] %v1344
    %1601 = vst [vmem:[#allocation7 + $0x74] sm:$0xf] %v1345
    %1602 = vst [vmem:[#allocation7 + $0x78] sm:$0xf] %v1346
    %1603 = vst [vmem:[#allocation7 + $0x7c] sm:$0xf] %v1347
    %1604 = vst [vmem:[#allocation7 + $0x80] sm:$0xf] %v1348
    %1605 = vst [vmem:[#allocation7 + $0x84] sm:$0xf] %v1349
    %1606 = vst [vmem:[#allocation7 + $0x88] sm:$0xf] %v1350
    %1607 = vst [vmem:[#allocation7 + $0x8c] sm:$0xf] %v1351
    %1608 = vst [vmem:[#allocation7 + $0x90] sm:$0xf] %v1352
    %1609 = vst [vmem:[#allocation7 + $0x94] sm:$0xf] %v1353
    %1610 = vst [vmem:[#allocation7 + $0x98] sm:$0xf] %v1354
    %1611 = vst [vmem:[#allocation7 + $0x9c] sm:$0xf] %v1355
    %1612 = vst [vmem:[#allocation7 + $0xa0] sm:$0xf] %v1356
    %1613 = vst [vmem:[#allocation7 + $0xa4] sm:$0xf] %v1357
    %1614 = vst [vmem:[#allocation7 + $0xa8] sm:$0xf] %v1358
    %1615 = vst [vmem:[#allocation7 + $0xac] sm:$0xf] %v1359
    %1616 = vst [vmem:[#allocation7 + $0xb0] sm:$0xf] %v1360
    %1617 = vst [vmem:[#allocation7 + $0xb4] sm:$0xf] %v1361
    %1618 = vst [vmem:[#allocation7 + $0xb8] sm:$0xf] %v1362
    %1619 = vst [vmem:[#allocation7 + $0xbc] sm:$0xf] %v1363
    %1620 = vst [vmem:[#allocation7 + $0xc0] sm:$0xf] %v1364
    %1621 = vst [vmem:[#allocation7 + $0xc4] sm:$0xf] %v1365
    %1622 = vst [vmem:[#allocation7 + $0xc8] sm:$0xf] %v1366
    %1623 = vst [vmem:[#allocation7 + $0xcc] sm:$0xf] %v1367
    %1624 = vst [vmem:[#allocation7 + $0xd0] sm:$0xf] %v1368
    %1625 = vst [vmem:[#allocation7 + $0xd4] sm:$0xf] %v1369
    %1626 = vst [vmem:[#allocation7 + $0xd8] sm:$0xf] %v1370
    %1627 = vst [vmem:[#allocation7 + $0xdc] sm:$0xf] %v1371
    %1628 = vst [vmem:[#allocation7 + $0xe0] sm:$0xf] %v1372
    %1629 = vst [vmem:[#allocation7 + $0xe4] sm:$0xf] %v1373
    %1630 = vst [vmem:[#allocation7 + $0xe8] sm:$0xf] %v1374
    %1631 = vst [vmem:[#allocation7 + $0xec] sm:$0xf] %v1375
    %1632 = vst [vmem:[#allocation7 + $0xf0] sm:$0xf] %v1376
    %1633 = vst [vmem:[#allocation7 + $0xf4] sm:$0xf] %v1377
    %1634 = vst [vmem:[#allocation7 + $0xf8] sm:$0xf] %v1378
    %1635 = vst [vmem:[#allocation7 + $0xfc] sm:$0xf] %v1379
    %1636 = vst [vmem:[#allocation7 + $0x100] sm:$0xf] %v1380
    %1637 = vst [vmem:[#allocation7 + $0x104] sm:$0xf] %v1381
    %1638 = vst [vmem:[#allocation7 + $0x108] sm:$0xf] %v1382
    %1639 = vst [vmem:[#allocation7 + $0x10c] sm:$0xf] %v1383
    %1640 = vst [vmem:[#allocation7 + $0x110] sm:$0xf] %v1384
    %1641 = vst [vmem:[#allocation7 + $0x114] sm:$0xf] %v1385
    %1642 = vst [vmem:[#allocation7 + $0x118] sm:$0xf] %v1386
    %1643 = vst [vmem:[#allocation7 + $0x11c] sm:$0xf] %v1387
    %1644 = vst [vmem:[#allocation7 + $0x120] sm:$0xf] %v1388
    %1645 = vst [vmem:[#allocation7 + $0x124] sm:$0xf] %v1389
    %1646 = vst [vmem:[#allocation7 + $0x128] sm:$0xf] %v1390
    %1647 = vst [vmem:[#allocation7 + $0x12c] sm:$0xf] %v1391
    %1648 = vst [vmem:[#allocation7 + $0x130] sm:$0xf] %v1392
    %1649 = vst [vmem:[#allocation7 + $0x134] sm:$0xf] %v1393
    %1650 = vst [vmem:[#allocation7 + $0x138] sm:$0xf] %v1394
    %1651 = vst [vmem:[#allocation7 + $0x13c] sm:$0xf] %v1395
    %1652 = vst [vmem:[#allocation7 + $0x140] sm:$0xf] %v1396
    %1653 = vst [vmem:[#allocation7 + $0x144] sm:$0xf] %v1397
    %1654 = vst [vmem:[#allocation7 + $0x148] sm:$0xf] %v1398
    %1655 = vst [vmem:[#allocation7 + $0x14c] sm:$0xf] %v1399
    %1656 = vst [vmem:[#allocation7 + $0x150] sm:$0xf] %v1400
    %1657 = vst [vmem:[#allocation7 + $0x154] sm:$0xf] %v1401
    %1658 = vst [vmem:[#allocation7 + $0x158] sm:$0xf] %v1402
    %1659 = vst [vmem:[#allocation7 + $0x15c] sm:$0xf] %v1403
    %1660 = vst [vmem:[#allocation7 + $0x160] sm:$0xf] %v1404
    %1661 = vst [vmem:[#allocation7 + $0x164] sm:$0xf] %v1405
    %1662 = vst [vmem:[#allocation7 + $0x168] sm:$0xf] %v1406
    %1663 = vst [vmem:[#allocation7 + $0x16c] sm:$0xf] %v1407
    %1664 = vst [vmem:[#allocation7 + $0x170] sm:$0xf] %v1408
    %1665 = vst [vmem:[#allocation7 + $0x174] sm:$0xf] %v1409
    %1666 = vst [vmem:[#allocation7 + $0x178] sm:$0xf] %v1410
    %1667 = vst [vmem:[#allocation7 + $0x17c] sm:$0xf] %v1411
    %1668 = vst [vmem:[#allocation7 + $0x180] sm:$0xf] %v1412
    %1669 = vst [vmem:[#allocation7 + $0x184] sm:$0xf] %v1413
    %1670 = vst [vmem:[#allocation7 + $0x188] sm:$0xf] %v1414
    %1671 = vst [vmem:[#allocation7 + $0x18c] sm:$0xf] %v1415
    %1672 = vst [vmem:[#allocation7 + $0x190] sm:$0xf] %v1416
    %1673 = vst [vmem:[#allocation7 + $0x194] sm:$0xf] %v1417
    %1674 = vst [vmem:[#allocation7 + $0x198] sm:$0xf] %v1418
    %1675 = vst [vmem:[#allocation7 + $0x19c] sm:$0xf] %v1419
    %1676 = vst [vmem:[#allocation7 + $0x1a0] sm:$0xf] %v1420
    %1677 = vst [vmem:[#allocation7 + $0x1a4] sm:$0xf] %v1421
    %1678 = vst [vmem:[#allocation7 + $0x1a8] sm:$0xf] %v1422
    %1679 = vst [vmem:[#allocation7 + $0x1ac] sm:$0xf] %v1423
    %1680 = vst [vmem:[#allocation7 + $0x1b0] sm:$0xf] %v1424
    %1681 = vst [vmem:[#allocation7 + $0x1b4] sm:$0xf] %v1425
    %1682 = vst [vmem:[#allocation7 + $0x1b8] sm:$0xf] %v1426
    %1683 = vst [vmem:[#allocation7 + $0x1bc] sm:$0xf] %v1427
    %1684 = vst [vmem:[#allocation7 + $0x1c0] sm:$0xf] %v1428
    %1685 = vst [vmem:[#allocation7 + $0x1c4] sm:$0xf] %v1429
    %1686 = vst [vmem:[#allocation7 + $0x1c8] sm:$0xf] %v1430
    %1687 = vst [vmem:[#allocation7 + $0x1cc] sm:$0xf] %v1431
    %1688 = vst [vmem:[#allocation7 + $0x1d0] sm:$0xf] %v1432
    %1689 = vst [vmem:[#allocation7 + $0x1d4] sm:$0xf] %v1433
    %1690 = vst [vmem:[#allocation7 + $0x1d8] sm:$0xf] %v1434
    %1691 = vst [vmem:[#allocation7 + $0x1dc] sm:$0xf] %v1435
    %1692 = vst [vmem:[#allocation7 + $0x1e0] sm:$0xf] %v1436
    %1693 = vst [vmem:[#allocation7 + $0x1e4] sm:$0xf] %v1437
    %1694 = vst [vmem:[#allocation7 + $0x1e8] sm:$0xf] %v1438
    %1695 = vst [vmem:[#allocation7 + $0x1ec] sm:$0xf] %v1439
    %1696 = vst [vmem:[#allocation7 + $0x1f0] sm:$0xf] %v1440
    %1697 = vst [vmem:[#allocation7 + $0x1f4] sm:$0xf] %v1441
    %1698 = vst [vmem:[#allocation7 + $0x1f8] sm:$0xf] %v1442
    %1699 = vst [vmem:[#allocation7 + $0x1fc] sm:$0xf] %v1443
    // Predicated region
    $region10: #{tpu_custom_call.1} parent=1 // pred_check
      _
    $region11: #{tpu_custom_call.1} parent=1 // pred_check_branch
      %1701 = sbr.rel (0) target = $region13
    $region12: #{tpu_custom_call.1} parent=1 // pred_region
      %s1703 = ssub.s32 8192, 8192
      %1704 = vsyncadd [#allocation6], %s1703
      %s1705 = sshll.u32 [#allocation7], 4
      %s1706 = int_to_ptr.vmem [resolvable:$true] %s1705
      %1711 = dma.vmem_to_hbm [thread:$0]  %s1706, 8192, %s2, [#allocation6], 64, 64, 4
    $region13: #{tpu_custom_call.1} parent=1 // pred_fallthru
      _
    // Predicated region
    $region14: #{tpu_custom_call.1} parent=1 // pred_check
      _
    $region15: #{tpu_custom_call.1} parent=1 // pred_check_branch
      %1713 = sbr.rel (0) target = $region17
    $region16: #{tpu_custom_call.1} parent=1 // pred_region
      %1714 = dma.done [#allocation6], 8192
    $region17: #{tpu_custom_call.1} parent=1 // pred_fallthru
      _
    %1715 = vsyncpa [#allocation5], 1
    %1716 = vsyncpa [#allocation6], 1

</llo_original>
